<compile_context>
chip_gen: v6e
topology: v6e:2x2x1
jax: 0.10.0
libtpu: 0.0.40
codegen_flags: <defaults>
</compile_context>

<pallas_src>
import functools

import jax
import jax.numpy as jnp
from jax.experimental import pallas as pl
from jax.experimental.pallas import tpu as pltpu

_F = 128  # padded feature width shared by all layers (128 / 64->128 / 2->128)


# ----------------------------- Pallas kernel --------------------------------
def _fused_gcn_kernel(a_ref, x_ref, w_ref, s_ref, t_ref, o_ref,
                      acc_ref, ha_ref, hb_ref, *, tm, tk):
    """Fused 3-layer GCN.

    grid = (layer l, row tile i, contraction tile k).
      layer 0: H1 = relu(bn(A @ X  @ W1))          -> ha scratch (bf16)
      layer 1: H2 = relu(   A @ H1 @ W2 + b2 )     -> hb scratch (bf16)
      layer 2: O  =         A @ H2 @ W3 + b3       -> o_ref (f32, padded)
    acc_ref accumulates A_tile @ H_in_tile in f32 across k.
    """
    l = pl.program_id(0)
    i = pl.program_id(1)
    k = pl.program_id(2)
    nk = pl.num_programs(2)

    @pl.when(k == 0)
    def _():
        acc_ref[...] = jnp.zeros_like(acc_ref)

    a = a_ref[...]  # (tm, tk) bf16 tile of A_hat

    # Aggregation: acc += A[i, k] @ H_in[k]   (MXU, bf16 operands, f32 acc)
    @pl.when(l == 0)
    def _():
        acc_ref[...] += jnp.dot(a, x_ref[...],
                                preferred_element_type=jnp.float32)

    @pl.when(l == 1)
    def _():
        acc_ref[...] += jnp.dot(a, ha_ref[pl.ds(k * tk, tk), :],
                                preferred_element_type=jnp.float32)

    @pl.when(l == 2)
    def _():
        acc_ref[...] += jnp.dot(a, hb_ref[pl.ds(k * tk, tk), :],
                                preferred_element_type=jnp.float32)

    # Epilogue on the last contraction step: weight matmul + folded affine.
    @pl.when(k == nk - 1)
    def _():
        h = jnp.dot(acc_ref[...].astype(jnp.bfloat16), w_ref[0],
                    preferred_element_type=jnp.float32)    # (tm, 128) f32
        h = h * s_ref[0] + t_ref[0]                        # bias+BN folded
        row0 = pl.multiple_of(i * tm, tm)

        @pl.when(l == 0)
        def _():
            ha_ref[pl.ds(row0, tm), :] = jnp.maximum(h, 0.0).astype(ha_ref.dtype)

        @pl.when(l == 1)
        def _():
            hb_ref[pl.ds(row0, tm), :] = jnp.maximum(h, 0.0).astype(hb_ref.dtype)

        @pl.when(l == 2)
        def _():
            o_ref[...] = h.astype(o_ref.dtype)


# ------------------------------- JAX glue ------------------------------------
def _round_up(x, m):
    return ((x + m - 1) // m) * m


def normalized_adjacency(edge_index, num_nodes):
    """Dense GCN normalization: A_hat = D^-1/2 (A + I) D^-1/2.

    Self-loops are merged with `maximum` so graphs that already contain them
    are not double-counted.
    """
    src, dst = edge_index[0], edge_index[1]
    a = jnp.zeros((num_nodes, num_nodes), jnp.float32)
    a = a.at[dst, src].set(1.0)                      # message src -> dst
    a = jnp.maximum(a, jnp.eye(num_nodes, dtype=jnp.float32))
    deg = a.sum(axis=1)
    dinv = jax.lax.rsqrt(jnp.maximum(deg, 1e-12))
    return a * dinv[:, None] * dinv[None, :]


def init_params(key, num_node_features):
    dims = [(num_node_features, 128), (128, 64), (64, 2)]
    params = {}
    for i, (fin, fout) in enumerate(dims, start=1):
        key, wk = jax.random.split(key)
        limit = (6.0 / (fin + fout)) ** 0.5          # glorot-like init
        params[f"w{i}"] = jax.random.uniform(
            wk, (fin, fout), jnp.float32, -limit, limit)
        params[f"b{i}"] = jnp.zeros((fout,), jnp.float32)
    # BatchNorm1d(128), eval mode: running_mean=0, running_var=1
    key, gk, bk = jax.random.split(key, 3)
    params["bn_gamma"] = 1.0 + 0.1 * jax.random.normal(gk, (128,), jnp.float32)
    params["bn_beta"] = 0.1 * jax.random.normal(bk, (128,), jnp.float32)
    params["bn_mean"] = jnp.zeros((128,), jnp.float32)
    params["bn_var"] = jnp.ones((128,), jnp.float32)
    return params


def gcn_forward(params, x, edge_index):
    n, f_in = x.shape
    assert f_in <= _F, "TODO(synk): num_node_features > 128 not supported"

    a_hat = normalized_adjacency(edge_index, n)      # (n, n) f32

    # Pad the node dimension to a tile multiple; zero rows/cols of A_hat keep
    # the result exact for the real nodes.
    n_pad = _round_up(max(n, 128), 128)
    if n_pad % 512 == 0:
        tile = 512                                   # sized for v7x 64 MiB VMEM
    elif n_pad % 256 == 0:
        tile = 256
    else:
        tile = 128
    tm = tk = tile

    # bf16 operands for HBM/VMEM bandwidth + full-rate MXU; note the D^-1/2
    # normalization loses some precision in bf16 (validated vs f32 reference).
    a_p = jnp.zeros((n_pad, n_pad), jnp.bfloat16).at[:n, :n].set(
        a_hat.astype(jnp.bfloat16))
    x_p = jnp.zeros((n_pad, _F), jnp.bfloat16).at[:n, :f_in].set(
        x.astype(jnp.bfloat16))

    # Zero-pad all weights to (128, 128) and stack -> (3, 128, 128) bf16.
    w1 = jnp.zeros((_F, _F), jnp.float32).at[:f_in, :128].set(params["w1"])
    w2 = jnp.zeros((_F, _F), jnp.float32).at[:128, :64].set(params["w2"])
    w3 = jnp.zeros((_F, _F), jnp.float32).at[:64, :2].set(params["w3"])
    w_stack = jnp.stack([w1, w2, w3]).astype(jnp.bfloat16)

    # Fold bias + eval-mode BatchNorm into a single (scale, shift) per layer.
    eps = 1e-5
    s1 = params["bn_gamma"] * jax.lax.rsqrt(params["bn_var"] + eps)
    t1 = params["b1"] * s1 + params["bn_beta"] - params["bn_mean"] * s1
    s2 = jnp.ones((_F,), jnp.float32)
    t2 = jnp.zeros((_F,), jnp.float32).at[:64].set(params["b2"])
    s3 = jnp.ones((_F,), jnp.float32)
    t3 = jnp.zeros((_F,), jnp.float32).at[:2].set(params["b3"])
    s_stack = jnp.stack([s1, s2, s3]).reshape(3, 1, _F)
    t_stack = jnp.stack([t1, t2, t3]).reshape(3, 1, _F)

    grid = (3, n_pad // tm, n_pad // tk)
    kernel = functools.partial(_fused_gcn_kernel, tm=tm, tk=tk)

    out_p = pl.pallas_call(
        kernel,
        out_shape=jax.ShapeDtypeStruct((n_pad, _F), jnp.float32),
        grid_spec=pltpu.PrefetchScalarGridSpec(
            num_scalar_prefetch=0,
            grid=grid,
            in_specs=[
                pl.BlockSpec((tm, tk), lambda l, i, k: (i, k)),    # A_hat
                pl.BlockSpec((tk, _F), lambda l, i, k: (k, 0)),    # X (layer 0)
                pl.BlockSpec((1, _F, _F), lambda l, i, k: (l, 0, 0)),  # W_l
                pl.BlockSpec((1, 1, _F), lambda l, i, k: (l, 0, 0)),   # scale_l
                pl.BlockSpec((1, 1, _F), lambda l, i, k: (l, 0, 0)),   # shift_l
            ],
            out_specs=pl.BlockSpec((tm, _F), lambda l, i, k: (i, 0)),
            scratch_shapes=[
                pltpu.VMEM((tm, _F), jnp.float32),        # accumulator
                pltpu.VMEM((n_pad, _F), jnp.bfloat16),    # H1 (VMEM-resident)
                pltpu.VMEM((n_pad, _F), jnp.bfloat16),    # H2 (VMEM-resident)
            ],
        ),
        compiler_params=pltpu.CompilerParams(
            # Row axis stays "arbitrary": fused layers read intermediates
            # produced by *all* row tiles, so it cannot be core-parallel.
            dimension_semantics=("arbitrary", "arbitrary", "arbitrary"),
            vmem_limit_bytes=48 * 1024 * 1024,   # fits v7x's 64 MiB physical
        ),
    )(a_p, x_p, w_stack, s_stack, t_stack)

    return out_p[:n, :2]                          # drop node + lane padding


# --------------------------- f32 reference (check) ---------------------------
def _reference_forward(params, x, edge_index):
    n = x.shape[0]
    a_hat = normalized_adjacency(edge_index, n)
    eps = 1e-5
    s1 = params["bn_gamma"] * jax.lax.rsqrt(params["bn_var"] + eps)
    h = a_hat @ (x @ params["w1"]) + params["b1"]
    h = (h - params["bn_mean"]) * s1 + params["bn_beta"]
    h = jnp.maximum(h, 0.0)
    h = a_hat @ (h @ params["w2"]) + params["b2"]
    h = jnp.maximum(h, 0.0)
    return a_hat @ (h @ params["w3"]) + params["b3"]


if __name__ == "__main__":
    key = jax.random.PRNGKey(0)
    num_nodes = 16
    num_node_features = 4

    key, xk = jax.random.split(key)
    x = jax.random.normal(xk, (num_nodes, num_node_features), jnp.float32)

    # deterministic small graph: bidirectional ring over 16 nodes
    src = jnp.arange(num_nodes, dtype=jnp.int32)
    dst = (src + 1) % num_nodes
    edge_index = jnp.stack(
        [jnp.concatenate([src, dst]), jnp.concatenate([dst, src])], axis=0)

    params = init_params(jax.random.PRNGKey(42), num_node_features)

    out = gcn_forward(params, x, edge_index)
    out = jax.block_until_ready(out)

    ref = _reference_forward(params, x, edge_index)
    assert out.shape == (num_nodes, 2)
    assert jnp.all(jnp.isfinite(out))
    max_err = jnp.max(jnp.abs(out - ref))
    assert max_err < 0.1 * (1.0 + jnp.max(jnp.abs(ref))), float(max_err)
    print("KERNEL_OK")
</pallas_src>

<mosaic_0001>
module attributes {stable_mosaic.version = 11 : i64} {
  func.func @_fused_gcn_kernel(%arg0: i32, %arg1: i32, %arg2: i32, %arg3: memref<128x128xbf16, #tpu.memory_space<vmem>>, %arg4: memref<128x128xbf16, #tpu.memory_space<vmem>>, %arg5: memref<1x128x128xbf16, #tpu.memory_space<vmem>>, %arg6: memref<1x1x128xf32, #tpu.memory_space<vmem>>, %arg7: memref<1x1x128xf32, #tpu.memory_space<vmem>>, %arg8: memref<128x128xf32, #tpu.memory_space<vmem>>, %arg9: memref<128x128xf32, #tpu.memory_space<vmem>>, %arg10: memref<128x128xbf16, #tpu.memory_space<vmem>>, %arg11: memref<128x128xbf16, #tpu.memory_space<vmem>>) attributes {dimension_semantics = [#tpu.dimension_semantics<arbitrary>, #tpu.dimension_semantics<arbitrary>, #tpu.dimension_semantics<arbitrary>], iteration_bounds = array<i64: 3, 1, 1>, scalar_prefetch = 0 : i64, scratch_operands = 3 : i64, tpu.core_type = #tpu.core_type<tc>, window_params = [{transform_indices = @transform_0, window_bounds = array<i64: 128, 128>}, {transform_indices = @transform_1, window_bounds = array<i64: 128, 128>}, {transform_indices = @transform_2, window_bounds = array<i64: 1, 128, 128>}, {transform_indices = @transform_3, window_bounds = array<i64: 1, 1, 128>}, {transform_indices = @transform_4, window_bounds = array<i64: 1, 1, 128>}, {transform_indices = @transform_5, window_bounds = array<i64: 128, 128>}]} {
    %c0_i32 = arith.constant 0 : i32
    %0 = arith.cmpi eq, %arg2, %c0_i32 : i32
    %1 = arith.extui %0 : i1 to i32
    %c0_i32_0 = arith.constant 0 : i32
    %2 = arith.cmpi ne, %1, %c0_i32_0 : i32
    scf.if %2 {
      %cst = arith.constant 0.000000e+00 : f32
      %16 = vector.broadcast %cst : f32 to vector<128x128xf32>
      %c0_8 = arith.constant 0 : index
      %c0_9 = arith.constant 0 : index
      %17 = vector.load %arg9[%c0_8, %c0_9] : memref<128x128xf32, #tpu.memory_space<vmem>>, vector<128x128xf32>
      tpu.vector_store %arg9[%c0_8, %c0_9], %16 {strides = array<i32>} : memref<128x128xf32, #tpu.memory_space<vmem>>, vector<128x128xf32>,
    } else {
    }
    %c0 = arith.constant 0 : index
    %c0_1 = arith.constant 0 : index
    %3 = vector.load %arg3[%c0, %c0_1] : memref<128x128xbf16, #tpu.memory_space<vmem>>, vector<128x128xbf16>
    %c0_i32_2 = arith.constant 0 : i32
    %4 = arith.cmpi eq, %arg0, %c0_i32_2 : i32
    %5 = arith.extui %4 : i1 to i32
    %c0_i32_3 = arith.constant 0 : i32
    %6 = arith.cmpi ne, %5, %c0_i32_3 : i32
    scf.if %6 {
      %c0_8 = arith.constant 0 : index
      %c0_9 = arith.constant 0 : index
      %16 = vector.load %arg9[%c0_8, %c0_9] : memref<128x128xf32, #tpu.memory_space<vmem>>, vector<128x128xf32>
      %c0_10 = arith.constant 0 : index
      %c0_11 = arith.constant 0 : index
      %17 = vector.load %arg4[%c0_10, %c0_11] : memref<128x128xbf16, #tpu.memory_space<vmem>>, vector<128x128xbf16>
      %cst = arith.constant dense<0.000000e+00> : vector<128x128xf32>
      %18 = tpu.matmul %3, %17, %cst {dimension_numbers = #tpu.dot_dimension_numbers<[1], [0], [0], [1], [0, 0, 1, 1], [], []>} : vector<128x128xbf16>, vector<128x128xbf16>, vector<128x128xf32> -> vector<128x128xf32>
      %19 = arith.addf %16, %18 : vector<128x128xf32>
      %c0_12 = arith.constant 0 : index
      %c0_13 = arith.constant 0 : index
      %20 = vector.load %arg9[%c0_12, %c0_13] : memref<128x128xf32, #tpu.memory_space<vmem>>, vector<128x128xf32>
      tpu.vector_store %arg9[%c0_12, %c0_13], %19 {strides = array<i32>} : memref<128x128xf32, #tpu.memory_space<vmem>>, vector<128x128xf32>,
    } else {
    }
    %c1_i32 = arith.constant 1 : i32
    %7 = arith.cmpi eq, %arg0, %c1_i32 : i32
    %8 = arith.extui %7 : i1 to i32
    %c0_i32_4 = arith.constant 0 : i32
    %9 = arith.cmpi ne, %8, %c0_i32_4 : i32
    scf.if %9 {
      %c0_8 = arith.constant 0 : index
      %c0_9 = arith.constant 0 : index
      %16 = vector.load %arg9[%c0_8, %c0_9] : memref<128x128xf32, #tpu.memory_space<vmem>>, vector<128x128xf32>
      %c128_i32 = arith.constant 128 : i32
      %17 = arith.muli %arg2, %c128_i32 : i32
      %18 = arith.index_cast %17 : i32 to index
      %c0_10 = arith.constant 0 : index
      %19 = vector.load %arg10[%18, %c0_10] : memref<128x128xbf16, #tpu.memory_space<vmem>>, vector<128x128xbf16>
      %cst = arith.constant dense<0.000000e+00> : vector<128x128xf32>
      %20 = tpu.matmul %3, %19, %cst {dimension_numbers = #tpu.dot_dimension_numbers<[1], [0], [0], [1], [0, 0, 1, 1], [], []>} : vector<128x128xbf16>, vector<128x128xbf16>, vector<128x128xf32> -> vector<128x128xf32>
      %21 = arith.addf %16, %20 : vector<128x128xf32>
      %c0_11 = arith.constant 0 : index
      %c0_12 = arith.constant 0 : index
      %22 = vector.load %arg9[%c0_11, %c0_12] : memref<128x128xf32, #tpu.memory_space<vmem>>, vector<128x128xf32>
      tpu.vector_store %arg9[%c0_11, %c0_12], %21 {strides = array<i32>} : memref<128x128xf32, #tpu.memory_space<vmem>>, vector<128x128xf32>,
    } else {
    }
    %c2_i32 = arith.constant 2 : i32
    %10 = arith.cmpi eq, %arg0, %c2_i32 : i32
    %11 = arith.extui %10 : i1 to i32
    %c0_i32_5 = arith.constant 0 : i32
    %12 = arith.cmpi ne, %11, %c0_i32_5 : i32
    scf.if %12 {
      %c0_8 = arith.constant 0 : index
      %c0_9 = arith.constant 0 : index
      %16 = vector.load %arg9[%c0_8, %c0_9] : memref<128x128xf32, #tpu.memory_space<vmem>>, vector<128x128xf32>
      %c128_i32 = arith.constant 128 : i32
      %17 = arith.muli %arg2, %c128_i32 : i32
      %18 = arith.index_cast %17 : i32 to index
      %c0_10 = arith.constant 0 : index
      %19 = vector.load %arg11[%18, %c0_10] : memref<128x128xbf16, #tpu.memory_space<vmem>>, vector<128x128xbf16>
      %cst = arith.constant dense<0.000000e+00> : vector<128x128xf32>
      %20 = tpu.matmul %3, %19, %cst {dimension_numbers = #tpu.dot_dimension_numbers<[1], [0], [0], [1], [0, 0, 1, 1], [], []>} : vector<128x128xbf16>, vector<128x128xbf16>, vector<128x128xf32> -> vector<128x128xf32>
      %21 = arith.addf %16, %20 : vector<128x128xf32>
      %c0_11 = arith.constant 0 : index
      %c0_12 = arith.constant 0 : index
      %22 = vector.load %arg9[%c0_11, %c0_12] : memref<128x128xf32, #tpu.memory_space<vmem>>, vector<128x128xf32>
      tpu.vector_store %arg9[%c0_11, %c0_12], %21 {strides = array<i32>} : memref<128x128xf32, #tpu.memory_space<vmem>>, vector<128x128xf32>,
    } else {
    }
    %c0_i32_6 = arith.constant 0 : i32
    %13 = arith.cmpi eq, %arg2, %c0_i32_6 : i32
    %14 = arith.extui %13 : i1 to i32
    %c0_i32_7 = arith.constant 0 : i32
    %15 = arith.cmpi ne, %14, %c0_i32_7 : i32
    scf.if %15 {
      %c0_8 = arith.constant 0 : index
      %c0_9 = arith.constant 0 : index
      %16 = vector.load %arg9[%c0_8, %c0_9] : memref<128x128xf32, #tpu.memory_space<vmem>>, vector<128x128xf32>
      %17 = arith.truncf %16 : vector<128x128xf32> to vector<128x128xbf16>
      %c0_10 = arith.constant 0 : index
      %c0_11 = arith.constant 0 : index
      %c0_12 = arith.constant 0 : index
      %18 = vector.load %arg5[%c0_10, %c0_11, %c0_12] : memref<1x128x128xbf16, #tpu.memory_space<vmem>>, vector<1x128x128xbf16>
      %19 = vector.shape_cast %18 : vector<1x128x128xbf16> to vector<128x128xbf16>
      %cst = arith.constant dense<0.000000e+00> : vector<128x128xf32>
      %20 = tpu.matmul %17, %19, %cst {dimension_numbers = #tpu.dot_dimension_numbers<[1], [0], [0], [1], [0, 0, 1, 1], [], []>} : vector<128x128xbf16>, vector<128x128xbf16>, vector<128x128xf32> -> vector<128x128xf32>
      %c0_13 = arith.constant 0 : index
      %c0_14 = arith.constant 0 : index
      %c0_15 = arith.constant 0 : index
      %21 = vector.load %arg6[%c0_13, %c0_14, %c0_15] : memref<1x1x128xf32, #tpu.memory_space<vmem>>, vector<1x1x128xf32>
      %22 = vector.shape_cast %21 : vector<1x1x128xf32> to vector<1x128xf32>
      %23 = vector.broadcast %22 : vector<1x128xf32> to vector<128x128xf32>
      %24 = arith.mulf %20, %23 : vector<128x128xf32>
      %c0_16 = arith.constant 0 : index
      %c0_17 = arith.constant 0 : index
      %c0_18 = arith.constant 0 : index
      %25 = vector.load %arg7[%c0_16, %c0_17, %c0_18] : memref<1x1x128xf32, #tpu.memory_space<vmem>>, vector<1x1x128xf32>
      %26 = vector.shape_cast %25 : vector<1x1x128xf32> to vector<1x128xf32>
      %27 = vector.broadcast %26 : vector<1x128xf32> to vector<128x128xf32>
      %28 = arith.addf %24, %27 : vector<128x128xf32>
      %c128_i32 = arith.constant 128 : i32
      %29 = arith.muli %arg1, %c128_i32 : i32
      %30 = tpu.assume_multiple %29, 128 : i32
      %c0_i32_19 = arith.constant 0 : i32
      %31 = arith.cmpi eq, %arg0, %c0_i32_19 : i32
      %32 = arith.extui %31 : i1 to i32
      %c0_i32_20 = arith.constant 0 : i32
      %33 = arith.cmpi ne, %32, %c0_i32_20 : i32
      scf.if %33 {
        %cst_25 = arith.constant 0.000000e+00 : f32
        %40 = vector.broadcast %cst_25 : f32 to vector<128x128xf32>
        %41 = arith.maximumf %28, %40 : vector<128x128xf32>
        %42 = arith.truncf %41 : vector<128x128xf32> to vector<128x128xbf16>
        %43 = arith.index_cast %30 : i32 to index
        %c0_26 = arith.constant 0 : index
        %44 = vector.load %arg10[%43, %c0_26] : memref<128x128xbf16, #tpu.memory_space<vmem>>, vector<128x128xbf16>
        tpu.vector_store %arg10[%43, %c0_26], %42 {strides = array<i32>} : memref<128x128xbf16, #tpu.memory_space<vmem>>, vector<128x128xbf16>,
      } else {
      }
      %c1_i32_21 = arith.constant 1 : i32
      %34 = arith.cmpi eq, %arg0, %c1_i32_21 : i32
      %35 = arith.extui %34 : i1 to i32
      %c0_i32_22 = arith.constant 0 : i32
      %36 = arith.cmpi ne, %35, %c0_i32_22 : i32
      scf.if %36 {
        %cst_25 = arith.constant 0.000000e+00 : f32
        %40 = vector.broadcast %cst_25 : f32 to vector<128x128xf32>
        %41 = arith.maximumf %28, %40 : vector<128x128xf32>
        %42 = arith.truncf %41 : vector<128x128xf32> to vector<128x128xbf16>
        %43 = arith.index_cast %30 : i32 to index
        %c0_26 = arith.constant 0 : index
        %44 = vector.load %arg11[%43, %c0_26] : memref<128x128xbf16, #tpu.memory_space<vmem>>, vector<128x128xbf16>
        tpu.vector_store %arg11[%43, %c0_26], %42 {strides = array<i32>} : memref<128x128xbf16, #tpu.memory_space<vmem>>, vector<128x128xbf16>,
      } else {
      }
      %c2_i32_23 = arith.constant 2 : i32
      %37 = arith.cmpi eq, %arg0, %c2_i32_23 : i32
      %38 = arith.extui %37 : i1 to i32
      %c0_i32_24 = arith.constant 0 : i32
      %39 = arith.cmpi ne, %38, %c0_i32_24 : i32
      scf.if %39 {
        %c0_25 = arith.constant 0 : index
        %c0_26 = arith.constant 0 : index
        %40 = vector.load %arg8[%c0_25, %c0_26] : memref<128x128xf32, #tpu.memory_space<vmem>>, vector<128x128xf32>
        tpu.vector_store %arg8[%c0_25, %c0_26], %28 {strides = array<i32>} : memref<128x128xf32, #tpu.memory_space<vmem>>, vector<128x128xf32>,
      } else {
      }
    } else {
    }
    return
  }
  func.func @transform_0(%arg0: i32, %arg1: i32, %arg2: i32) -> (i32, i32) {
    %c0_i32 = arith.constant 0 : i32
    return %arg1, %arg2 : i32, i32
  }
  func.func @transform_1(%arg0: i32, %arg1: i32, %arg2: i32) -> (i32, i32) {
    %c0_i32 = arith.constant 0 : i32
    %c0_i32_0 = arith.constant 0 : i32
    return %arg2, %c0_i32 : i32, i32
  }
  func.func @transform_2(%arg0: i32, %arg1: i32, %arg2: i32) -> (i32, i32, i32) {
    %c0_i32 = arith.constant 0 : i32
    %c0_i32_0 = arith.constant 0 : i32
    %c0_i32_1 = arith.constant 0 : i32
    return %arg0, %c0_i32, %c0_i32_0 : i32, i32, i32
  }
  func.func @transform_3(%arg0: i32, %arg1: i32, %arg2: i32) -> (i32, i32, i32) {
    %c0_i32 = arith.constant 0 : i32
    %c0_i32_0 = arith.constant 0 : i32
    %c0_i32_1 = arith.constant 0 : i32
    return %arg0, %c0_i32, %c0_i32_0 : i32, i32, i32
  }
  func.func @transform_4(%arg0: i32, %arg1: i32, %arg2: i32) -> (i32, i32, i32) {
    %c0_i32 = arith.constant 0 : i32
    %c0_i32_0 = arith.constant 0 : i32
    %c0_i32_1 = arith.constant 0 : i32
    return %arg0, %c0_i32, %c0_i32_0 : i32, i32, i32
  }
  func.func @transform_5(%arg0: i32, %arg1: i32, %arg2: i32) -> (i32, i32) {
    %c0_i32 = arith.constant 0 : i32
    %c0_i32_0 = arith.constant 0 : i32
    return %arg1, %c0_i32 : i32, i32
  }
}

</mosaic_0001>

<llo_original>
// kernel: tpu_custom_call.1
$region0: #{tpu_custom_call.1}
  #allocation0 [shape = 'u32[]', space=smem, size = 0x4, offset = 0x4, fixed_abs, tag = 'smem constant byte address 0x4 - core index']
  #allocation1 [shape = 'u32[144,128]{1,0:T(1,128)}', space=vmem, size = 0x12000, scoped, tag = 'internal scratch']
  #allocation2 [shape = 'f32[128,128]{1,0:T(8,128)}', space=vmem, size = 0x10000, scoped, tag = 'scratch operand']
  #allocation3 [shape = 'bf16[128,128]{1,0:T(8,128)(2,1)}', space=vmem, size = 0x8000, scoped, tag = 'scratch operand']
  #allocation4 [shape = 'bf16[128,128]{1,0:T(8,128)(2,1)}', space=vmem, size = 0x8000, scoped, tag = 'scratch operand']
  %s0 = inlined_call_operand.hbm [shape: bf16[128,128], index: 0, kind: input, shape index: {}]
  %s1 = inlined_call_operand.hbm [shape: bf16[128,128], index: 1, kind: input, shape index: {}]
  %s2 = inlined_call_operand.hbm [shape: bf16[3,128,128], index: 2, kind: input, shape index: {}]
  %s3 = inlined_call_operand.vmem [shape: f32[3,1,128], index: 3, kind: input, shape index: {}]
  %s4 = inlined_call_operand.vmem [shape: f32[3,1,128], index: 4, kind: input, shape index: {}]
  %s5 = inlined_call_operand.hbm [shape: f32[128,128], index: 5, kind: output, shape index: {}]
  %s6 = sld [smem:[#allocation0]]
  $region97: #{tpu_custom_call.1} parent=0
    _
  %s8 = ssub.s32 1, %s6
  %s9 = scalar_select 0, %s8, %s6
  $region1: #{tpu_custom_call.1} parent=0
    #allocation5 [shape = 'u8[32768]{0}', space=vmem, size = 0x8000, scoped, tag = 'input window, operand 0, single buffered']
    #allocation6 [shape = 's32[2]{0}', space=sflag, size = 0x8, scoped, tag = 'scoped memory for tpu_custom_call.1']
    #allocation7 [shape = 's32[2]{0}', space=sflag, size = 0x8, scoped, tag = 'scoped memory for tpu_custom_call.1']
    #allocation8 [shape = 'u8[32768]{0}', space=vmem, size = 0x8000, scoped, tag = 'input window, operand 1, single buffered']
    #allocation9 [shape = 's32[1]{0}', space=sflag, size = 0x4, scoped, tag = 'scoped memory for tpu_custom_call.1']
    #allocation10 [shape = 'u8[65536]{0}', space=vmem, size = 0x10000, scoped, tag = 'input window, operand 2']
    #allocation11 [shape = 'u8[65536]{0}', space=vmem, size = 0x10000, scoped, tag = 'output window, operand 0, single buffered']
    %10 = vsyncpa [#allocation6], 0
    %11 = vsyncpa [#allocation9], 0
    %12 = vsyncpa [#allocation7], 0
    loop: start=0, step=1, limit=5
    $region2: #{tpu_custom_call.1} parent=1 // loop_pre_header
      _
    $region3: #{tpu_custom_call.1} parent=1 // loop_header
      %s14 = sphi 0, %s18
      %p15 = scmp.ge.s32.totalorder %s14, 5
      %s21 = sphi 0, %s40
      %s22 = sphi 0, %s36
      %s23 = sphi 0, %s32
      %s24 = sphi 0, %s21
      %s25 = sphi 0, %s22
      %s26 = sphi 0, %s23
      %s27 = sphi 0, %s24
      %s28 = sphi 0, %s25
      %s29 = sphi 0, %s26
      %s45 = sphi 0, %s47
      %s48 = sphi 0, %s45
      %s49 = sphi 0, %s48
      %s65 = sphi 0, %s49
      %s71 = sphi 0, %s73
      %s74 = sphi 0, %s71
      %s75 = sphi 0, %s74
      %s91 = sphi 0, %s75
      %s97 = sphi 0, %s99
      %s100 = sphi 0, %s97
      %s101 = sphi 0, %s100
      %s117 = sphi 0, %s101
      %s123 = sphi 0, %s125
      %s126 = sphi 0, %s123
      %s127 = sphi 0, %s126
      %s143 = sphi 0, %s127
      %s149 = sphi 0, %s151
      %s152 = sphi 0, %s149
      %s153 = sphi 0, %s152
      %s169 = sphi 0, %s153
      %s175 = sphi 0, %s177
      %s178 = sphi 0, %s175
      %s179 = sphi 0, %s178
      %s195 = sphi 0, %s179
    $region4: #{tpu_custom_call.1} parent=1 // loop_header_branch
      %17 = sbr.rel (%p15) target = $region8
    $region5: #{tpu_custom_call.1} parent=1 // loop_body
      %s19 = ssub.s32 %s14, 1
      %s20 = ssub.s32 %s14, 2
      %s30 = sadd.s32 1, %s23
      %p31 = scmp.ge.s32.totalorder %s30, 1
      %s32 = scalar_select %p31, 0, %s30
      %s33 = sadd.s32 1, %s22
      %s34 = scalar_select %p31, %s33, %s22
      %p35 = scmp.ge.s32.totalorder %s34, 1
      %s36 = scalar_select %p35, 0, %s34
      %s37 = sadd.s32 1, %s21
      %s38 = scalar_select %p35, %s37, %s21
      %p39 = scmp.ge.s32.totalorder %s38, 3
      %s40 = scalar_select %p39, 0, %s38
      %s41 = ssub.s32 %s22, %s36
      %s42 = ssub.s32 %s23, %s32
      %s43 = sor.u32 %s41, %s42
      %p44 = scmp.eq.s32.totalorder %s43, 0
      %s46 = sadd.s32 %s45, 1
      %s47 = scalar_select %p44, %s45, %s46
      %p50 = pneg %p44
      %p51 = scmp.eq.s32.totalorder %s14, 2
      %p52 = por %p50, %p51
      %p53 = scmp.ne.s32.totalorder %s45, %s48
      %p54 = scmp.eq.s32.totalorder %s14, 0
      %p55 = por %p53, %p54
      %p56 = scmp.ne.s32.totalorder %s45, %s48
      %p57 = scmp.eq.s32.totalorder %s19, 2
      %p58 = por %p56, %p57
      %p59 = scmp.ne.s32.totalorder %s48, %s49
      %p60 = scmp.eq.s32.totalorder %s19, 0
      %p61 = por %p59, %p60
      %p62 = scmp.ne.s32.totalorder %s48, %s49
      %p63 = scmp.eq.s32.totalorder %s20, 2
      %p64 = por %p62, %p63
      %p66 = scmp.ne.s32.totalorder %s49, %s65
      %p67 = scmp.eq.s32.totalorder %s20, 0
      %p68 = por %p66, %p67
      %s69 = ssub.s32 %s23, %s32
      %p70 = scmp.eq.s32.totalorder %s69, 0
      %s72 = sadd.s32 %s71, 1
      %s73 = scalar_select %p70, %s71, %s72
      %p76 = pneg %p70
      %p77 = scmp.eq.s32.totalorder %s14, 2
      %p78 = por %p76, %p77
      %p79 = scmp.ne.s32.totalorder %s71, %s74
      %p80 = scmp.eq.s32.totalorder %s14, 0
      %p81 = por %p79, %p80
      %p82 = scmp.ne.s32.totalorder %s71, %s74
      %p83 = scmp.eq.s32.totalorder %s19, 2
      %p84 = por %p82, %p83
      %p85 = scmp.ne.s32.totalorder %s74, %s75
      %p86 = scmp.eq.s32.totalorder %s19, 0
      %p87 = por %p85, %p86
      %p88 = scmp.ne.s32.totalorder %s74, %s75
      %p89 = scmp.eq.s32.totalorder %s20, 2
      %p90 = por %p88, %p89
      %p92 = scmp.ne.s32.totalorder %s75, %s91
      %p93 = scmp.eq.s32.totalorder %s20, 0
      %p94 = por %p92, %p93
      %s95 = ssub.s32 %s21, %s40
      %p96 = scmp.eq.s32.totalorder %s95, 0
      %s98 = sadd.s32 %s97, 1
      %s99 = scalar_select %p96, %s97, %s98
      %p102 = pneg %p96
      %p103 = scmp.eq.s32.totalorder %s14, 2
      %p104 = por %p102, %p103
      %p105 = scmp.ne.s32.totalorder %s97, %s100
      %p106 = scmp.eq.s32.totalorder %s14, 0
      %p107 = por %p105, %p106
      %p108 = scmp.ne.s32.totalorder %s97, %s100
      %p109 = scmp.eq.s32.totalorder %s19, 2
      %p110 = por %p108, %p109
      %p111 = scmp.ne.s32.totalorder %s100, %s101
      %p112 = scmp.eq.s32.totalorder %s19, 0
      %p113 = por %p111, %p112
      %p114 = scmp.ne.s32.totalorder %s100, %s101
      %p115 = scmp.eq.s32.totalorder %s20, 2
      %p116 = por %p114, %p115
      %p118 = scmp.ne.s32.totalorder %s101, %s117
      %p119 = scmp.eq.s32.totalorder %s20, 0
      %p120 = por %p118, %p119
      %s121 = ssub.s32 %s21, %s40
      %p122 = scmp.eq.s32.totalorder %s121, 0
      %s124 = sadd.s32 %s123, 1
      %s125 = scalar_select %p122, %s123, %s124
      %p128 = pneg %p122
      %p129 = scmp.eq.s32.totalorder %s14, 2
      %p130 = por %p128, %p129
      %p131 = scmp.ne.s32.totalorder %s123, %s126
      %p132 = scmp.eq.s32.totalorder %s14, 0
      %p133 = por %p131, %p132
      %p134 = scmp.ne.s32.totalorder %s123, %s126
      %p135 = scmp.eq.s32.totalorder %s19, 2
      %p136 = por %p134, %p135
      %p137 = scmp.ne.s32.totalorder %s126, %s127
      %p138 = scmp.eq.s32.totalorder %s19, 0
      %p139 = por %p137, %p138
      %p140 = scmp.ne.s32.totalorder %s126, %s127
      %p141 = scmp.eq.s32.totalorder %s20, 2
      %p142 = por %p140, %p141
      %p144 = scmp.ne.s32.totalorder %s127, %s143
      %p145 = scmp.eq.s32.totalorder %s20, 0
      %p146 = por %p144, %p145
      %s147 = ssub.s32 %s21, %s40
      %p148 = scmp.eq.s32.totalorder %s147, 0
      %s150 = sadd.s32 %s149, 1
      %s151 = scalar_select %p148, %s149, %s150
      %p154 = pneg %p148
      %p155 = scmp.eq.s32.totalorder %s14, 2
      %p156 = por %p154, %p155
      %p157 = scmp.ne.s32.totalorder %s149, %s152
      %p158 = scmp.eq.s32.totalorder %s14, 0
      %p159 = por %p157, %p158
      %p160 = scmp.ne.s32.totalorder %s149, %s152
      %p161 = scmp.eq.s32.totalorder %s19, 2
      %p162 = por %p160, %p161
      %p163 = scmp.ne.s32.totalorder %s152, %s153
      %p164 = scmp.eq.s32.totalorder %s19, 0
      %p165 = por %p163, %p164
      %p166 = scmp.ne.s32.totalorder %s152, %s153
      %p167 = scmp.eq.s32.totalorder %s20, 2
      %p168 = por %p166, %p167
      %p170 = scmp.ne.s32.totalorder %s153, %s169
      %p171 = scmp.eq.s32.totalorder %s20, 0
      %p172 = por %p170, %p171
      %s173 = ssub.s32 %s22, %s36
      %p174 = scmp.eq.s32.totalorder %s173, 0
      %s176 = sadd.s32 %s175, 1
      %s177 = scalar_select %p174, %s175, %s176
      %p180 = pneg %p174
      %p181 = scmp.eq.s32.totalorder %s14, 2
      %p182 = por %p180, %p181
      %p183 = scmp.ne.s32.totalorder %s175, %s178
      %p184 = scmp.eq.s32.totalorder %s14, 0
      %p185 = por %p183, %p184
      %p186 = scmp.ne.s32.totalorder %s175, %s178
      %p187 = scmp.eq.s32.totalorder %s19, 2
      %p188 = por %p186, %p187
      %p189 = scmp.ne.s32.totalorder %s178, %s179
      %p190 = scmp.eq.s32.totalorder %s19, 0
      %p191 = por %p189, %p190
      %p192 = scmp.ne.s32.totalorder %s178, %s179
      %p193 = scmp.eq.s32.totalorder %s20, 2
      %p194 = por %p192, %p193
      %p196 = scmp.ne.s32.totalorder %s179, %s195
      %p197 = scmp.eq.s32.totalorder %s20, 0
      %p198 = por %p196, %p197
      %p199 = scmp.le.s32.totalorder 1, %s14
      %p200 = scmp.lt.s32.totalorder %s14, 4
      %p201 = pnand %p199, %p200
      %p202 = pneg %p201
      // Predicated region
      $region9: #{tpu_custom_call.1} parent=5 // pred_check
        _
      $region10: #{tpu_custom_call.1} parent=5 // pred_check_branch
        %204 = sbr.rel (%p201) target = $region12
      $region11: #{tpu_custom_call.1} parent=5 // pred_region
        %s205 = ssub.s32 %s14, 1
        // Predicated region
        $region13: #{tpu_custom_call.1} parent=11 // pred_check
          %p206 = pneg %p61
        $region14: #{tpu_custom_call.1} parent=11 // pred_check_branch
          %208 = sbr.rel (%p206) target = $region16
        $region15: #{tpu_custom_call.1} parent=11 // pred_region
          %s209 = smul.u32 16, %s25
          %s211 = ssub.s32 1024, 1024
          %212 = vsyncadd [#allocation6], %s211
          %s213 = sadd.s32 %s26, %s209
          %s214 = smul.addr %s213, 64
          %s215 = scalar_lea.hbm %s0, %s214
          %s216 = sshll.u32 [#allocation5], 4
          %s217 = int_to_ptr.vmem [resolvable:$true] %s216
          %222 = dma.hbm_to_vmem [thread:$0]  %s215, 1024, %s217, [#allocation6], 64, 64, 4
        $region16: #{tpu_custom_call.1} parent=11 // pred_fallthru
          _
        // Predicated region
        $region17: #{tpu_custom_call.1} parent=11 // pred_check
          %p223 = pneg %p87
        $region18: #{tpu_custom_call.1} parent=11 // pred_check_branch
          %225 = sbr.rel (%p223) target = $region20
        $region19: #{tpu_custom_call.1} parent=11 // pred_region
          %s226 = smul.u32 16, %s26
          %s228 = ssub.s32 1024, 1024
          %229 = vsyncadd [#allocation9], %s228
          %s230 = smul.addr %s226, 64
          %s231 = scalar_lea.hbm %s1, %s230
          %s232 = sshll.u32 [#allocation8], 4
          %s233 = int_to_ptr.vmem [resolvable:$true] %s232
          %238 = dma.hbm_to_vmem [thread:$0]  %s231, 1024, %s233, [#allocation9], 64, 64, 4
        $region20: #{tpu_custom_call.1} parent=11 // pred_fallthru
          _
      $region12: #{tpu_custom_call.1} parent=5 // pred_fallthru
        _
      %p239 = scmp.lt.s32.totalorder %s14, 3
      // Predicated region
      $region21: #{tpu_custom_call.1} parent=5 // pred_check
        %p240 = pneg %p239
      $region22: #{tpu_custom_call.1} parent=5 // pred_check_branch
        %242 = sbr.rel (%p240) target = $region24
      $region23: #{tpu_custom_call.1} parent=5 // pred_region
        // Predicated region
        $region25: #{tpu_custom_call.1} parent=23 // pred_check
          %p243 = pneg %p107
        $region26: #{tpu_custom_call.1} parent=23 // pred_check_branch
          %245 = sbr.rel (%p243) target = $region28
        $region27: #{tpu_custom_call.1} parent=23 // pred_region
          %s246 = sand.u32 %s14, 1
          %s247 = scalar_lea.sflag [#allocation6], %s246
          %s248 = sand.u32 %s97, 1
          %s249 = smul.addr %s248, 64
          %s250 = scalar_lea.vmem [#allocation10], %s249
          %s252 = ssub.s32 1024, 1024
          %253 = vsyncadd %s247, %s252
          %s254 = smul.addr %s21, 16
          %s255 = smul.addr %s254, 64
          %s256 = scalar_lea.hbm %s2, %s255
          %s257 = sshll.u32 %s250, 4
          %s258 = int_to_ptr.vmem [resolvable:$true] %s257
          %263 = dma.hbm_to_vmem [thread:$0]  %s256, 1024, %s258, %s247, 64, 64, 4
        $region28: #{tpu_custom_call.1} parent=23 // pred_fallthru
          _
        // Predicated region
        $region29: #{tpu_custom_call.1} parent=23 // pred_check
          %p264 = pneg %p133
        $region30: #{tpu_custom_call.1} parent=23 // pred_check_branch
          %266 = sbr.rel (%p264) target = $region32
        $region31: #{tpu_custom_call.1} parent=23 // pred_region
          %p267 = scmp.lt.s32.totalorder %s21, 2
          %s268 = scalar_select %p267, %s21, 2
          %s269 = scalar_lea.vmem %s3, %s268
        $region32: #{tpu_custom_call.1} parent=23 // pred_fallthru
          _
        // Predicated region
        $region33: #{tpu_custom_call.1} parent=23 // pred_check
          %p270 = pneg %p159
        $region34: #{tpu_custom_call.1} parent=23 // pred_check_branch
          %272 = sbr.rel (%p270) target = $region36
        $region35: #{tpu_custom_call.1} parent=23 // pred_region
          %p273 = scmp.lt.s32.totalorder %s21, 2
          %s274 = scalar_select %p273, %s21, 2
          %s275 = scalar_lea.vmem %s4, %s274
        $region36: #{tpu_custom_call.1} parent=23 // pred_fallthru
          _
      $region24: #{tpu_custom_call.1} parent=5 // pred_fallthru
        _
      %p276 = scmp.le.s32.totalorder 1, %s14
      %p277 = scmp.lt.s32.totalorder %s14, 4
      %p278 = pnand %p276, %p277
      %p279 = pneg %p278
      // Predicated region
      $region37: #{tpu_custom_call.1} parent=5 // pred_check
        _
      $region38: #{tpu_custom_call.1} parent=5 // pred_check_branch
        %281 = sbr.rel (%p278) target = $region40
      $region39: #{tpu_custom_call.1} parent=5 // pred_region
        %s282 = ssub.s32 %s14, 1
        // Predicated region
        $region41: #{tpu_custom_call.1} parent=39 // pred_check
          %p283 = pneg %p61
        $region42: #{tpu_custom_call.1} parent=39 // pred_check_branch
          %285 = sbr.rel (%p283) target = $region44
        $region43: #{tpu_custom_call.1} parent=39 // pred_region
          %286 = dma.done [#allocation6], 1024
        $region44: #{tpu_custom_call.1} parent=39 // pred_fallthru
          _
        // Predicated region
        $region45: #{tpu_custom_call.1} parent=39 // pred_check
          %p287 = pneg %p87
        $region46: #{tpu_custom_call.1} parent=39 // pred_check_branch
          %289 = sbr.rel (%p287) target = $region48
        $region47: #{tpu_custom_call.1} parent=39 // pred_region
          %290 = dma.done [#allocation9], 1024
        $region48: #{tpu_custom_call.1} parent=39 // pred_fallthru
          _
        %s291 = sand.u32 %s19, 1
        %s292 = scalar_lea.sflag [#allocation6], %s291
        %s293 = sand.u32 %s100, 1
        %s294 = smul.addr %s293, 64
        %s295 = scalar_lea.vmem [#allocation10], %s294
        // Predicated region
        $region49: #{tpu_custom_call.1} parent=39 // pred_check
          %p296 = pneg %p113
        $region50: #{tpu_custom_call.1} parent=39 // pred_check_branch
          %298 = sbr.rel (%p296) target = $region52
        $region51: #{tpu_custom_call.1} parent=39 // pred_region
          %299 = dma.done %s292, 1024
        $region52: #{tpu_custom_call.1} parent=39 // pred_fallthru
          _
        %p300 = pneg %p61
        %p301 = pneg %p58
        %p302 = pneg %p87
        %p303 = pneg %p84
        %s304 = sand.u32 %s19, 1
        %s305 = scalar_lea.sflag [#allocation6], %s304
        %s306 = sand.u32 %s100, 1
        %s307 = smul.addr %s306, 64
        %s308 = scalar_lea.vmem [#allocation10], %s307
        %p309 = pneg %p113
        %p310 = pneg %p110
        %p311 = scmp.lt.s32.totalorder %s24, 2
        %s312 = scalar_select %p311, %s24, 2
        %s313 = scalar_lea.vmem %s3, %s312
        %p314 = pneg %p139
        %p315 = pneg %p136
        %p316 = scmp.lt.s32.totalorder %s24, 2
        %s317 = scalar_select %p316, %s24, 2
        %s318 = scalar_lea.vmem %s4, %s317
        %p319 = pneg %p165
        %p320 = pneg %p162
        %p321 = pneg %p191
        %p322 = pneg %p188
        %s323 = smul.u32 16, %s25
        %s324 = smul.u32 16, %s26
        %p325 = scmp.lt.s32.totalorder %s24, 2
        %s326 = scalar_select %p325, %s24, 2
        %s327 = scalar_lea.vmem %s3, %s326
        %p328 = scmp.lt.s32.totalorder %s24, 2
        %s329 = scalar_select %p328, %s24, 2
        %s330 = scalar_lea.vmem %s4, %s329
        %s331 = smul.u32 16, %s25
        %p333 = scmp.eq.s32.totalorder %s26, 0
        // Predicated region
        $region53: #{tpu_custom_call.1} parent=39 // pred_check
          %p334 = pneg %p333
        $region54: #{tpu_custom_call.1} parent=39 // pred_check_branch
          %336 = sbr.rel (%p334) target = $region56
        $region55: #{tpu_custom_call.1} parent=39 // pred_region
          %337 = vst [vmem:[#allocation2] sm:$0xff] 0.0
          %338 = vst [vmem:[#allocation2 + $0x8] sm:$0xff] 0.0
          %339 = vst [vmem:[#allocation2 + $0x10] sm:$0xff] 0.0
          %340 = vst [vmem:[#allocation2 + $0x18] sm:$0xff] 0.0
          %341 = vst [vmem:[#allocation2 + $0x20] sm:$0xff] 0.0
          %342 = vst [vmem:[#allocation2 + $0x28] sm:$0xff] 0.0
          %343 = vst [vmem:[#allocation2 + $0x30] sm:$0xff] 0.0
          %344 = vst [vmem:[#allocation2 + $0x38] sm:$0xff] 0.0
          %345 = vst [vmem:[#allocation2 + $0x40] sm:$0xff] 0.0
          %346 = vst [vmem:[#allocation2 + $0x48] sm:$0xff] 0.0
          %347 = vst [vmem:[#allocation2 + $0x50] sm:$0xff] 0.0
          %348 = vst [vmem:[#allocation2 + $0x58] sm:$0xff] 0.0
          %349 = vst [vmem:[#allocation2 + $0x60] sm:$0xff] 0.0
          %350 = vst [vmem:[#allocation2 + $0x68] sm:$0xff] 0.0
          %351 = vst [vmem:[#allocation2 + $0x70] sm:$0xff] 0.0
          %352 = vst [vmem:[#allocation2 + $0x78] sm:$0xff] 0.0
        $region56: #{tpu_custom_call.1} parent=39 // pred_fallthru
          _
        %v353 = vld [vmem:[#allocation5] sm:$0xf]
        %v354 = vld [vmem:[#allocation5 + $0x4] sm:$0xf]
        %v355 = vld [vmem:[#allocation5 + $0x8] sm:$0xf]
        %v356 = vld [vmem:[#allocation5 + $0xc] sm:$0xf]
        %v357 = vld [vmem:[#allocation5 + $0x10] sm:$0xf]
        %v358 = vld [vmem:[#allocation5 + $0x14] sm:$0xf]
        %v359 = vld [vmem:[#allocation5 + $0x18] sm:$0xf]
        %v360 = vld [vmem:[#allocation5 + $0x1c] sm:$0xf]
        %v361 = vld [vmem:[#allocation5 + $0x20] sm:$0xf]
        %v362 = vld [vmem:[#allocation5 + $0x24] sm:$0xf]
        %v363 = vld [vmem:[#allocation5 + $0x28] sm:$0xf]
        %v364 = vld [vmem:[#allocation5 + $0x2c] sm:$0xf]
        %v365 = vld [vmem:[#allocation5 + $0x30] sm:$0xf]
        %v366 = vld [vmem:[#allocation5 + $0x34] sm:$0xf]
        %v367 = vld [vmem:[#allocation5 + $0x38] sm:$0xf]
        %v368 = vld [vmem:[#allocation5 + $0x3c] sm:$0xf]
        %p369 = scmp.eq.s32.totalorder %s24, 0
        // Predicated region
        $region57: #{tpu_custom_call.1} parent=39 // pred_check
          %p370 = pneg %p369
        $region58: #{tpu_custom_call.1} parent=39 // pred_check_branch
          %372 = sbr.rel (%p370) target = $region60
        $region59: #{tpu_custom_call.1} parent=39 // pred_region
          %v373 = vld [vmem:[#allocation2] sm:$0xff]
          %v374 = vld [vmem:[#allocation2 + $0x8] sm:$0xff]
          %v375 = vld [vmem:[#allocation2 + $0x10] sm:$0xff]
          %v376 = vld [vmem:[#allocation2 + $0x18] sm:$0xff]
          %v377 = vld [vmem:[#allocation2 + $0x20] sm:$0xff]
          %v378 = vld [vmem:[#allocation2 + $0x28] sm:$0xff]
          %v379 = vld [vmem:[#allocation2 + $0x30] sm:$0xff]
          %v380 = vld [vmem:[#allocation2 + $0x38] sm:$0xff]
          %v381 = vld [vmem:[#allocation2 + $0x40] sm:$0xff]
          %v382 = vld [vmem:[#allocation2 + $0x48] sm:$0xff]
          %v383 = vld [vmem:[#allocation2 + $0x50] sm:$0xff]
          %v384 = vld [vmem:[#allocation2 + $0x58] sm:$0xff]
          %v385 = vld [vmem:[#allocation2 + $0x60] sm:$0xff]
          %v386 = vld [vmem:[#allocation2 + $0x68] sm:$0xff]
          %v387 = vld [vmem:[#allocation2 + $0x70] sm:$0xff]
          %v388 = vld [vmem:[#allocation2 + $0x78] sm:$0xff]
          %v389 = vld [vmem:[#allocation8] sm:$0xf]
          %v390 = vld [vmem:[#allocation8 + $0x4] sm:$0xf]
          %v391 = vld [vmem:[#allocation8 + $0x8] sm:$0xf]
          %v392 = vld [vmem:[#allocation8 + $0xc] sm:$0xf]
          %v393 = vld [vmem:[#allocation8 + $0x10] sm:$0xf]
          %v394 = vld [vmem:[#allocation8 + $0x14] sm:$0xf]
          %v395 = vld [vmem:[#allocation8 + $0x18] sm:$0xf]
          %v396 = vld [vmem:[#allocation8 + $0x1c] sm:$0xf]
          %v397 = vld [vmem:[#allocation8 + $0x20] sm:$0xf]
          %v398 = vld [vmem:[#allocation8 + $0x24] sm:$0xf]
          %v399 = vld [vmem:[#allocation8 + $0x28] sm:$0xf]
          %v400 = vld [vmem:[#allocation8 + $0x2c] sm:$0xf]
          %v401 = vld [vmem:[#allocation8 + $0x30] sm:$0xf]
          %v402 = vld [vmem:[#allocation8 + $0x34] sm:$0xf]
          %v403 = vld [vmem:[#allocation8 + $0x38] sm:$0xf]
          %v404 = vld [vmem:[#allocation8 + $0x3c] sm:$0xf]
          %v421 = vunpack.c.l.b16 %v353
          %v422 = vunpack.c.l.b16 %v354
          %v423 = vunpack.c.l.b16 %v355
          %v424 = vunpack.c.l.b16 %v356
          %v425 = vunpack.c.l.b16 %v357
          %v426 = vunpack.c.l.b16 %v358
          %v427 = vunpack.c.l.b16 %v359
          %v428 = vunpack.c.l.b16 %v360
          %v429 = vunpack.c.l.b16 %v361
          %v430 = vunpack.c.l.b16 %v362
          %v431 = vunpack.c.l.b16 %v363
          %v432 = vunpack.c.l.b16 %v364
          %v433 = vunpack.c.l.b16 %v365
          %v434 = vunpack.c.l.b16 %v366
          %v435 = vunpack.c.l.b16 %v367
          %v436 = vunpack.c.l.b16 %v368
          %v437 = vpack.c.b16 %v422, %v421
          %v438 = vpack.c.b16 %v424, %v423
          %v439 = vpack.c.b16 %v426, %v425
          %v440 = vpack.c.b16 %v428, %v427
          %v441 = vpack.c.b16 %v430, %v429
          %v442 = vpack.c.b16 %v432, %v431
          %v443 = vpack.c.b16 %v434, %v433
          %v444 = vpack.c.b16 %v436, %v435
          %v469 = vunpack.c.l.b16 %v389
          %v470 = vunpack.c.l.b16 %v390
          %v471 = vunpack.c.l.b16 %v391
          %v472 = vunpack.c.l.b16 %v392
          %v473 = vunpack.c.l.b16 %v393
          %v474 = vunpack.c.l.b16 %v394
          %v475 = vunpack.c.l.b16 %v395
          %v476 = vunpack.c.l.b16 %v396
          %v477 = vunpack.c.l.b16 %v397
          %v478 = vunpack.c.l.b16 %v398
          %v479 = vunpack.c.l.b16 %v399
          %v480 = vunpack.c.l.b16 %v400
          %v481 = vunpack.c.l.b16 %v401
          %v482 = vunpack.c.l.b16 %v402
          %v483 = vunpack.c.l.b16 %v403
          %v484 = vunpack.c.l.b16 %v404
          %v485 = vpack.c.b16 %v470, %v469
          %v486 = vpack.c.b16 %v472, %v471
          %v487 = vpack.c.b16 %v474, %v473
          %v488 = vpack.c.b16 %v476, %v475
          %v489 = vpack.c.b16 %v478, %v477
          %v490 = vpack.c.b16 %v480, %v479
          %v491 = vpack.c.b16 %v482, %v481
          %v492 = vpack.c.b16 %v484, %v483
          %501 = vmatprep.subr.bf16.mxu0 0
          %502 = vmatpush1.bf16.msra.mxu0 %v492
          %503 = vmatprep.subr.bf16.mxu0 0
          %504 = vmatpush1.bf16.msra.mxu0 %v491
          %505 = vmatprep.subr.bf16.mxu0 0
          %506 = vmatpush1.bf16.msra.mxu0 %v490
          %507 = vmatprep.subr.bf16.mxu0 0
          %508 = vmatpush1.bf16.msra.mxu0 %v489
          %509 = vmatprep.subr.bf16.mxu0 0
          %510 = vmatpush1.bf16.msra.mxu0 %v488
          %511 = vmatprep.subr.bf16.mxu0 0
          %512 = vmatpush1.bf16.msra.mxu0 %v487
          %513 = vmatprep.subr.bf16.mxu0 0
          %514 = vmatpush1.bf16.msra.mxu0 %v486
          %515 = vmatprep.subr.bf16.mxu0 0
          %516 = vmatpush1.bf16.msra.mxu0 %v485
          %517 = vmatprep.subr.bf16.mxu0 0
          %518 = vmatpush2.bf16.msra.mxu0 0
          %519 = vmatprep.subr.bf16.mxu0 0
          %520 = vmatpush2.bf16.msra.mxu0 0
          %521 = vmatprep.subr.bf16.mxu0 0
          %522 = vmatpush2.bf16.msra.mxu0 0
          %523 = vmatprep.subr.bf16.mxu0 0
          %524 = vmatpush2.bf16.msra.mxu0 0
          %525 = vmatprep.subr.bf16.mxu0 0
          %526 = vmatpush2.bf16.msra.mxu0 0
          %527 = vmatprep.subr.bf16.mxu0 0
          %528 = vmatpush2.bf16.msra.mxu0 0
          %529 = vmatprep.subr.bf16.mxu0 0
          %530 = vmatpush2.bf16.msra.mxu0 0
          %531 = vmatprep.subr.bf16.mxu0 0
          %532 = vmatpush2.bf16.msra.mxu0 0
          %533 = vmatprep.mubr.bf16.mxu0 0
          %534 = vmatmul.mubr.bf16.gmra.mxu0 %v437
          %v535 = vpop.f32.mrf.mxu0
          %v536 = vadd.f32 0.0, %v535
          %v537 = vpop.f32.mrf.mxu0
          %v538 = vpop.f32.mrf.mxu0
          %v539 = vadd.f32 0.0, %v538
          %v540 = vpop.f32.mrf.mxu0
          %541 = vmatprep.mubr.bf16.mxu0 0
          %542 = vmatmul.mubr.bf16.gmra.mxu0 %v438
          %v543 = vpop.f32.mrf.mxu0
          %v544 = vadd.f32 0.0, %v543
          %v545 = vpop.f32.mrf.mxu0
          %v546 = vpop.f32.mrf.mxu0
          %v547 = vadd.f32 0.0, %v546
          %v548 = vpop.f32.mrf.mxu0
          %549 = vmatprep.mubr.bf16.mxu0 0
          %550 = vmatmul.mubr.bf16.gmra.mxu0 %v439
          %v551 = vpop.f32.mrf.mxu0
          %v552 = vadd.f32 0.0, %v551
          %v553 = vpop.f32.mrf.mxu0
          %v554 = vpop.f32.mrf.mxu0
          %v555 = vadd.f32 0.0, %v554
          %v556 = vpop.f32.mrf.mxu0
          %557 = vmatprep.mubr.bf16.mxu0 0
          %558 = vmatmul.mubr.bf16.gmra.mxu0 %v440
          %v559 = vpop.f32.mrf.mxu0
          %v560 = vadd.f32 0.0, %v559
          %v561 = vpop.f32.mrf.mxu0
          %v562 = vpop.f32.mrf.mxu0
          %v563 = vadd.f32 0.0, %v562
          %v564 = vpop.f32.mrf.mxu0
          %565 = vmatprep.mubr.bf16.mxu0 0
          %566 = vmatmul.mubr.bf16.gmra.mxu0 %v441
          %v567 = vpop.f32.mrf.mxu0
          %v568 = vadd.f32 0.0, %v567
          %v569 = vpop.f32.mrf.mxu0
          %v570 = vpop.f32.mrf.mxu0
          %v571 = vadd.f32 0.0, %v570
          %v572 = vpop.f32.mrf.mxu0
          %573 = vmatprep.mubr.bf16.mxu0 0
          %574 = vmatmul.mubr.bf16.gmra.mxu0 %v442
          %v575 = vpop.f32.mrf.mxu0
          %v576 = vadd.f32 0.0, %v575
          %v577 = vpop.f32.mrf.mxu0
          %v578 = vpop.f32.mrf.mxu0
          %v579 = vadd.f32 0.0, %v578
          %v580 = vpop.f32.mrf.mxu0
          %581 = vmatprep.mubr.bf16.mxu0 0
          %582 = vmatmul.mubr.bf16.gmra.mxu0 %v443
          %v583 = vpop.f32.mrf.mxu0
          %v584 = vadd.f32 0.0, %v583
          %v585 = vpop.f32.mrf.mxu0
          %v586 = vpop.f32.mrf.mxu0
          %v587 = vadd.f32 0.0, %v586
          %v588 = vpop.f32.mrf.mxu0
          %589 = vmatprep.mubr.bf16.mxu0 0
          %590 = vmatmul.mubr.bf16.gmra.mxu0 %v444
          %v591 = vpop.f32.mrf.mxu0
          %v592 = vadd.f32 0.0, %v591
          %v593 = vpop.f32.mrf.mxu0
          %v594 = vpop.f32.mrf.mxu0
          %v595 = vadd.f32 0.0, %v594
          %v596 = vpop.f32.mrf.mxu0
          %597 = vdwg.mxu0
          %v598 = vadd.f32 %v373, %v536
          %v599 = vadd.f32 %v374, %v539
          %v600 = vadd.f32 %v375, %v544
          %v601 = vadd.f32 %v376, %v547
          %v602 = vadd.f32 %v377, %v552
          %v603 = vadd.f32 %v378, %v555
          %v604 = vadd.f32 %v379, %v560
          %v605 = vadd.f32 %v380, %v563
          %v606 = vadd.f32 %v381, %v568
          %v607 = vadd.f32 %v382, %v571
          %v608 = vadd.f32 %v383, %v576
          %v609 = vadd.f32 %v384, %v579
          %v610 = vadd.f32 %v385, %v584
          %v611 = vadd.f32 %v386, %v587
          %v612 = vadd.f32 %v387, %v592
          %v613 = vadd.f32 %v388, %v595
          %614 = vst [vmem:[#allocation2] sm:$0xff] %v598
          %615 = vst [vmem:[#allocation2 + $0x8] sm:$0xff] %v599
          %616 = vst [vmem:[#allocation2 + $0x10] sm:$0xff] %v600
          %617 = vst [vmem:[#allocation2 + $0x18] sm:$0xff] %v601
          %618 = vst [vmem:[#allocation2 + $0x20] sm:$0xff] %v602
          %619 = vst [vmem:[#allocation2 + $0x28] sm:$0xff] %v603
          %620 = vst [vmem:[#allocation2 + $0x30] sm:$0xff] %v604
          %621 = vst [vmem:[#allocation2 + $0x38] sm:$0xff] %v605
          %622 = vst [vmem:[#allocation2 + $0x40] sm:$0xff] %v606
          %623 = vst [vmem:[#allocation2 + $0x48] sm:$0xff] %v607
          %624 = vst [vmem:[#allocation2 + $0x50] sm:$0xff] %v608
          %625 = vst [vmem:[#allocation2 + $0x58] sm:$0xff] %v609
          %626 = vst [vmem:[#allocation2 + $0x60] sm:$0xff] %v610
          %627 = vst [vmem:[#allocation2 + $0x68] sm:$0xff] %v611
          %628 = vst [vmem:[#allocation2 + $0x70] sm:$0xff] %v612
          %629 = vst [vmem:[#allocation2 + $0x78] sm:$0xff] %v613
        $region60: #{tpu_custom_call.1} parent=39 // pred_fallthru
          _
        %p630 = scmp.eq.s32.totalorder %s24, 1
        // Predicated region
        $region61: #{tpu_custom_call.1} parent=39 // pred_check
          %p631 = pneg %p630
        $region62: #{tpu_custom_call.1} parent=39 // pred_check_branch
          %633 = sbr.rel (%p631) target = $region64
        $region63: #{tpu_custom_call.1} parent=39 // pred_region
          %v634 = vld [vmem:[#allocation2] sm:$0xff]
          %v635 = vld [vmem:[#allocation2 + $0x8] sm:$0xff]
          %v636 = vld [vmem:[#allocation2 + $0x10] sm:$0xff]
          %v637 = vld [vmem:[#allocation2 + $0x18] sm:$0xff]
          %v638 = vld [vmem:[#allocation2 + $0x20] sm:$0xff]
          %v639 = vld [vmem:[#allocation2 + $0x28] sm:$0xff]
          %v640 = vld [vmem:[#allocation2 + $0x30] sm:$0xff]
          %v641 = vld [vmem:[#allocation2 + $0x38] sm:$0xff]
          %v642 = vld [vmem:[#allocation2 + $0x40] sm:$0xff]
          %v643 = vld [vmem:[#allocation2 + $0x48] sm:$0xff]
          %v644 = vld [vmem:[#allocation2 + $0x50] sm:$0xff]
          %v645 = vld [vmem:[#allocation2 + $0x58] sm:$0xff]
          %v646 = vld [vmem:[#allocation2 + $0x60] sm:$0xff]
          %v647 = vld [vmem:[#allocation2 + $0x68] sm:$0xff]
          %v648 = vld [vmem:[#allocation2 + $0x70] sm:$0xff]
          %v649 = vld [vmem:[#allocation2 + $0x78] sm:$0xff]
          %s650 = smul.u32 %s26, 128
          %s651 = sshra.s32 %s650, 3
          %s652 = sand.u32 %s650, 7
          %s653 = smul.addr %s651, 4
          %s654 = scalar_lea.vmem [#allocation3], %s653
          %v655 = vld [vmem:[%s654] sm:$0xf]
          %v656 = vld [vmem:[%s654 + $0x4] sm:$0xf]
          %v657 = vld [vmem:[%s654 + $0x8] sm:$0xf]
          %v658 = vld [vmem:[%s654 + $0xc] sm:$0xf]
          %v659 = vld [vmem:[%s654 + $0x10] sm:$0xf]
          %v660 = vld [vmem:[%s654 + $0x14] sm:$0xf]
          %v661 = vld [vmem:[%s654 + $0x18] sm:$0xf]
          %v662 = vld [vmem:[%s654 + $0x1c] sm:$0xf]
          %v663 = vld [vmem:[%s654 + $0x20] sm:$0xf]
          %v664 = vld [vmem:[%s654 + $0x24] sm:$0xf]
          %v665 = vld [vmem:[%s654 + $0x28] sm:$0xf]
          %v666 = vld [vmem:[%s654 + $0x2c] sm:$0xf]
          %v667 = vld [vmem:[%s654 + $0x30] sm:$0xf]
          %v668 = vld [vmem:[%s654 + $0x34] sm:$0xf]
          %v669 = vld [vmem:[%s654 + $0x38] sm:$0xf]
          %v670 = vld [vmem:[%s654 + $0x3c] sm:$0xf]
          %v687 = vunpack.c.l.b16 %v353
          %v688 = vunpack.c.l.b16 %v354
          %v689 = vunpack.c.l.b16 %v355
          %v690 = vunpack.c.l.b16 %v356
          %v691 = vunpack.c.l.b16 %v357
          %v692 = vunpack.c.l.b16 %v358
          %v693 = vunpack.c.l.b16 %v359
          %v694 = vunpack.c.l.b16 %v360
          %v695 = vunpack.c.l.b16 %v361
          %v696 = vunpack.c.l.b16 %v362
          %v697 = vunpack.c.l.b16 %v363
          %v698 = vunpack.c.l.b16 %v364
          %v699 = vunpack.c.l.b16 %v365
          %v700 = vunpack.c.l.b16 %v366
          %v701 = vunpack.c.l.b16 %v367
          %v702 = vunpack.c.l.b16 %v368
          %v703 = vpack.c.b16 %v688, %v687
          %v704 = vpack.c.b16 %v690, %v689
          %v705 = vpack.c.b16 %v692, %v691
          %v706 = vpack.c.b16 %v694, %v693
          %v707 = vpack.c.b16 %v696, %v695
          %v708 = vpack.c.b16 %v698, %v697
          %v709 = vpack.c.b16 %v700, %v699
          %v710 = vpack.c.b16 %v702, %v701
          %v735 = vunpack.c.l.b16 %v655
          %v736 = vunpack.c.l.b16 %v656
          %v737 = vunpack.c.l.b16 %v657
          %v738 = vunpack.c.l.b16 %v658
          %v739 = vunpack.c.l.b16 %v659
          %v740 = vunpack.c.l.b16 %v660
          %v741 = vunpack.c.l.b16 %v661
          %v742 = vunpack.c.l.b16 %v662
          %v743 = vunpack.c.l.b16 %v663
          %v744 = vunpack.c.l.b16 %v664
          %v745 = vunpack.c.l.b16 %v665
          %v746 = vunpack.c.l.b16 %v666
          %v747 = vunpack.c.l.b16 %v667
          %v748 = vunpack.c.l.b16 %v668
          %v749 = vunpack.c.l.b16 %v669
          %v750 = vunpack.c.l.b16 %v670
          %v751 = vpack.c.b16 %v736, %v735
          %v752 = vpack.c.b16 %v738, %v737
          %v753 = vpack.c.b16 %v740, %v739
          %v754 = vpack.c.b16 %v742, %v741
          %v755 = vpack.c.b16 %v744, %v743
          %v756 = vpack.c.b16 %v746, %v745
          %v757 = vpack.c.b16 %v748, %v747
          %v758 = vpack.c.b16 %v750, %v749
          %767 = vmatprep.subr.bf16.mxu0 0
          %768 = vmatpush1.bf16.msra.mxu0 %v758
          %769 = vmatprep.subr.bf16.mxu0 0
          %770 = vmatpush1.bf16.msra.mxu0 %v757
          %771 = vmatprep.subr.bf16.mxu0 0
          %772 = vmatpush1.bf16.msra.mxu0 %v756
          %773 = vmatprep.subr.bf16.mxu0 0
          %774 = vmatpush1.bf16.msra.mxu0 %v755
          %775 = vmatprep.subr.bf16.mxu0 0
          %776 = vmatpush1.bf16.msra.mxu0 %v754
          %777 = vmatprep.subr.bf16.mxu0 0
          %778 = vmatpush1.bf16.msra.mxu0 %v753
          %779 = vmatprep.subr.bf16.mxu0 0
          %780 = vmatpush1.bf16.msra.mxu0 %v752
          %781 = vmatprep.subr.bf16.mxu0 0
          %782 = vmatpush1.bf16.msra.mxu0 %v751
          %783 = vmatprep.subr.bf16.mxu0 0
          %784 = vmatpush2.bf16.msra.mxu0 0
          %785 = vmatprep.subr.bf16.mxu0 0
          %786 = vmatpush2.bf16.msra.mxu0 0
          %787 = vmatprep.subr.bf16.mxu0 0
          %788 = vmatpush2.bf16.msra.mxu0 0
          %789 = vmatprep.subr.bf16.mxu0 0
          %790 = vmatpush2.bf16.msra.mxu0 0
          %791 = vmatprep.subr.bf16.mxu0 0
          %792 = vmatpush2.bf16.msra.mxu0 0
          %793 = vmatprep.subr.bf16.mxu0 0
          %794 = vmatpush2.bf16.msra.mxu0 0
          %795 = vmatprep.subr.bf16.mxu0 0
          %796 = vmatpush2.bf16.msra.mxu0 0
          %797 = vmatprep.subr.bf16.mxu0 0
          %798 = vmatpush2.bf16.msra.mxu0 0
          %799 = vmatprep.mubr.bf16.mxu0 0
          %800 = vmatmul.mubr.bf16.gmra.mxu0 %v703
          %v801 = vpop.f32.mrf.mxu0
          %v802 = vadd.f32 0.0, %v801
          %v803 = vpop.f32.mrf.mxu0
          %v804 = vpop.f32.mrf.mxu0
          %v805 = vadd.f32 0.0, %v804
          %v806 = vpop.f32.mrf.mxu0
          %807 = vmatprep.mubr.bf16.mxu0 0
          %808 = vmatmul.mubr.bf16.gmra.mxu0 %v704
          %v809 = vpop.f32.mrf.mxu0
          %v810 = vadd.f32 0.0, %v809
          %v811 = vpop.f32.mrf.mxu0
          %v812 = vpop.f32.mrf.mxu0
          %v813 = vadd.f32 0.0, %v812
          %v814 = vpop.f32.mrf.mxu0
          %815 = vmatprep.mubr.bf16.mxu0 0
          %816 = vmatmul.mubr.bf16.gmra.mxu0 %v705
          %v817 = vpop.f32.mrf.mxu0
          %v818 = vadd.f32 0.0, %v817
          %v819 = vpop.f32.mrf.mxu0
          %v820 = vpop.f32.mrf.mxu0
          %v821 = vadd.f32 0.0, %v820
          %v822 = vpop.f32.mrf.mxu0
          %823 = vmatprep.mubr.bf16.mxu0 0
          %824 = vmatmul.mubr.bf16.gmra.mxu0 %v706
          %v825 = vpop.f32.mrf.mxu0
          %v826 = vadd.f32 0.0, %v825
          %v827 = vpop.f32.mrf.mxu0
          %v828 = vpop.f32.mrf.mxu0
          %v829 = vadd.f32 0.0, %v828
          %v830 = vpop.f32.mrf.mxu0
          %831 = vmatprep.mubr.bf16.mxu0 0
          %832 = vmatmul.mubr.bf16.gmra.mxu0 %v707
          %v833 = vpop.f32.mrf.mxu0
          %v834 = vadd.f32 0.0, %v833
          %v835 = vpop.f32.mrf.mxu0
          %v836 = vpop.f32.mrf.mxu0
          %v837 = vadd.f32 0.0, %v836
          %v838 = vpop.f32.mrf.mxu0
          %839 = vmatprep.mubr.bf16.mxu0 0
          %840 = vmatmul.mubr.bf16.gmra.mxu0 %v708
          %v841 = vpop.f32.mrf.mxu0
          %v842 = vadd.f32 0.0, %v841
          %v843 = vpop.f32.mrf.mxu0
          %v844 = vpop.f32.mrf.mxu0
          %v845 = vadd.f32 0.0, %v844
          %v846 = vpop.f32.mrf.mxu0
          %847 = vmatprep.mubr.bf16.mxu0 0
          %848 = vmatmul.mubr.bf16.gmra.mxu0 %v709
          %v849 = vpop.f32.mrf.mxu0
          %v850 = vadd.f32 0.0, %v849
          %v851 = vpop.f32.mrf.mxu0
          %v852 = vpop.f32.mrf.mxu0
          %v853 = vadd.f32 0.0, %v852
          %v854 = vpop.f32.mrf.mxu0
          %855 = vmatprep.mubr.bf16.mxu0 0
          %856 = vmatmul.mubr.bf16.gmra.mxu0 %v710
          %v857 = vpop.f32.mrf.mxu0
          %v858 = vadd.f32 0.0, %v857
          %v859 = vpop.f32.mrf.mxu0
          %v860 = vpop.f32.mrf.mxu0
          %v861 = vadd.f32 0.0, %v860
          %v862 = vpop.f32.mrf.mxu0
          %863 = vdwg.mxu0
          %v864 = vadd.f32 %v634, %v802
          %v865 = vadd.f32 %v635, %v805
          %v866 = vadd.f32 %v636, %v810
          %v867 = vadd.f32 %v637, %v813
          %v868 = vadd.f32 %v638, %v818
          %v869 = vadd.f32 %v639, %v821
          %v870 = vadd.f32 %v640, %v826
          %v871 = vadd.f32 %v641, %v829
          %v872 = vadd.f32 %v642, %v834
          %v873 = vadd.f32 %v643, %v837
          %v874 = vadd.f32 %v644, %v842
          %v875 = vadd.f32 %v645, %v845
          %v876 = vadd.f32 %v646, %v850
          %v877 = vadd.f32 %v647, %v853
          %v878 = vadd.f32 %v648, %v858
          %v879 = vadd.f32 %v649, %v861
          %880 = vst [vmem:[#allocation2] sm:$0xff] %v864
          %881 = vst [vmem:[#allocation2 + $0x8] sm:$0xff] %v865
          %882 = vst [vmem:[#allocation2 + $0x10] sm:$0xff] %v866
          %883 = vst [vmem:[#allocation2 + $0x18] sm:$0xff] %v867
          %884 = vst [vmem:[#allocation2 + $0x20] sm:$0xff] %v868
          %885 = vst [vmem:[#allocation2 + $0x28] sm:$0xff] %v869
          %886 = vst [vmem:[#allocation2 + $0x30] sm:$0xff] %v870
          %887 = vst [vmem:[#allocation2 + $0x38] sm:$0xff] %v871
          %888 = vst [vmem:[#allocation2 + $0x40] sm:$0xff] %v872
          %889 = vst [vmem:[#allocation2 + $0x48] sm:$0xff] %v873
          %890 = vst [vmem:[#allocation2 + $0x50] sm:$0xff] %v874
          %891 = vst [vmem:[#allocation2 + $0x58] sm:$0xff] %v875
          %892 = vst [vmem:[#allocation2 + $0x60] sm:$0xff] %v876
          %893 = vst [vmem:[#allocation2 + $0x68] sm:$0xff] %v877
          %894 = vst [vmem:[#allocation2 + $0x70] sm:$0xff] %v878
          %895 = vst [vmem:[#allocation2 + $0x78] sm:$0xff] %v879
        $region64: #{tpu_custom_call.1} parent=39 // pred_fallthru
          _
        %p896 = scmp.eq.s32.totalorder %s24, 2
        // Predicated region
        $region65: #{tpu_custom_call.1} parent=39 // pred_check
          %p897 = pneg %p896
        $region66: #{tpu_custom_call.1} parent=39 // pred_check_branch
          %899 = sbr.rel (%p897) target = $region68
        $region67: #{tpu_custom_call.1} parent=39 // pred_region
          %v900 = vld [vmem:[#allocation2] sm:$0xff]
          %v901 = vld [vmem:[#allocation2 + $0x8] sm:$0xff]
          %v902 = vld [vmem:[#allocation2 + $0x10] sm:$0xff]
          %v903 = vld [vmem:[#allocation2 + $0x18] sm:$0xff]
          %v904 = vld [vmem:[#allocation2 + $0x20] sm:$0xff]
          %v905 = vld [vmem:[#allocation2 + $0x28] sm:$0xff]
          %v906 = vld [vmem:[#allocation2 + $0x30] sm:$0xff]
          %v907 = vld [vmem:[#allocation2 + $0x38] sm:$0xff]
          %v908 = vld [vmem:[#allocation2 + $0x40] sm:$0xff]
          %v909 = vld [vmem:[#allocation2 + $0x48] sm:$0xff]
          %v910 = vld [vmem:[#allocation2 + $0x50] sm:$0xff]
          %v911 = vld [vmem:[#allocation2 + $0x58] sm:$0xff]
          %v912 = vld [vmem:[#allocation2 + $0x60] sm:$0xff]
          %v913 = vld [vmem:[#allocation2 + $0x68] sm:$0xff]
          %v914 = vld [vmem:[#allocation2 + $0x70] sm:$0xff]
          %v915 = vld [vmem:[#allocation2 + $0x78] sm:$0xff]
          %s916 = smul.u32 %s26, 128
          %s917 = sshra.s32 %s916, 3
          %s918 = sand.u32 %s916, 7
          %s919 = smul.addr %s917, 4
          %s920 = scalar_lea.vmem [#allocation4], %s919
          %v921 = vld [vmem:[%s920] sm:$0xf]
          %v922 = vld [vmem:[%s920 + $0x4] sm:$0xf]
          %v923 = vld [vmem:[%s920 + $0x8] sm:$0xf]
          %v924 = vld [vmem:[%s920 + $0xc] sm:$0xf]
          %v925 = vld [vmem:[%s920 + $0x10] sm:$0xf]
          %v926 = vld [vmem:[%s920 + $0x14] sm:$0xf]
          %v927 = vld [vmem:[%s920 + $0x18] sm:$0xf]
          %v928 = vld [vmem:[%s920 + $0x1c] sm:$0xf]
          %v929 = vld [vmem:[%s920 + $0x20] sm:$0xf]
          %v930 = vld [vmem:[%s920 + $0x24] sm:$0xf]
          %v931 = vld [vmem:[%s920 + $0x28] sm:$0xf]
          %v932 = vld [vmem:[%s920 + $0x2c] sm:$0xf]
          %v933 = vld [vmem:[%s920 + $0x30] sm:$0xf]
          %v934 = vld [vmem:[%s920 + $0x34] sm:$0xf]
          %v935 = vld [vmem:[%s920 + $0x38] sm:$0xf]
          %v936 = vld [vmem:[%s920 + $0x3c] sm:$0xf]
          %v953 = vunpack.c.l.b16 %v353
          %v954 = vunpack.c.l.b16 %v354
          %v955 = vunpack.c.l.b16 %v355
          %v956 = vunpack.c.l.b16 %v356
          %v957 = vunpack.c.l.b16 %v357
          %v958 = vunpack.c.l.b16 %v358
          %v959 = vunpack.c.l.b16 %v359
          %v960 = vunpack.c.l.b16 %v360
          %v961 = vunpack.c.l.b16 %v361
          %v962 = vunpack.c.l.b16 %v362
          %v963 = vunpack.c.l.b16 %v363
          %v964 = vunpack.c.l.b16 %v364
          %v965 = vunpack.c.l.b16 %v365
          %v966 = vunpack.c.l.b16 %v366
          %v967 = vunpack.c.l.b16 %v367
          %v968 = vunpack.c.l.b16 %v368
          %v969 = vpack.c.b16 %v954, %v953
          %v970 = vpack.c.b16 %v956, %v955
          %v971 = vpack.c.b16 %v958, %v957
          %v972 = vpack.c.b16 %v960, %v959
          %v973 = vpack.c.b16 %v962, %v961
          %v974 = vpack.c.b16 %v964, %v963
          %v975 = vpack.c.b16 %v966, %v965
          %v976 = vpack.c.b16 %v968, %v967
          %v1001 = vunpack.c.l.b16 %v921
          %v1002 = vunpack.c.l.b16 %v922
          %v1003 = vunpack.c.l.b16 %v923
          %v1004 = vunpack.c.l.b16 %v924
          %v1005 = vunpack.c.l.b16 %v925
          %v1006 = vunpack.c.l.b16 %v926
          %v1007 = vunpack.c.l.b16 %v927
          %v1008 = vunpack.c.l.b16 %v928
          %v1009 = vunpack.c.l.b16 %v929
          %v1010 = vunpack.c.l.b16 %v930
          %v1011 = vunpack.c.l.b16 %v931
          %v1012 = vunpack.c.l.b16 %v932
          %v1013 = vunpack.c.l.b16 %v933
          %v1014 = vunpack.c.l.b16 %v934
          %v1015 = vunpack.c.l.b16 %v935
          %v1016 = vunpack.c.l.b16 %v936
          %v1017 = vpack.c.b16 %v1002, %v1001
          %v1018 = vpack.c.b16 %v1004, %v1003
          %v1019 = vpack.c.b16 %v1006, %v1005
          %v1020 = vpack.c.b16 %v1008, %v1007
          %v1021 = vpack.c.b16 %v1010, %v1009
          %v1022 = vpack.c.b16 %v1012, %v1011
          %v1023 = vpack.c.b16 %v1014, %v1013
          %v1024 = vpack.c.b16 %v1016, %v1015
          %1033 = vmatprep.subr.bf16.mxu0 0
          %1034 = vmatpush1.bf16.msra.mxu0 %v1024
          %1035 = vmatprep.subr.bf16.mxu0 0
          %1036 = vmatpush1.bf16.msra.mxu0 %v1023
          %1037 = vmatprep.subr.bf16.mxu0 0
          %1038 = vmatpush1.bf16.msra.mxu0 %v1022
          %1039 = vmatprep.subr.bf16.mxu0 0
          %1040 = vmatpush1.bf16.msra.mxu0 %v1021
          %1041 = vmatprep.subr.bf16.mxu0 0
          %1042 = vmatpush1.bf16.msra.mxu0 %v1020
          %1043 = vmatprep.subr.bf16.mxu0 0
          %1044 = vmatpush1.bf16.msra.mxu0 %v1019
          %1045 = vmatprep.subr.bf16.mxu0 0
          %1046 = vmatpush1.bf16.msra.mxu0 %v1018
          %1047 = vmatprep.subr.bf16.mxu0 0
          %1048 = vmatpush1.bf16.msra.mxu0 %v1017
          %1049 = vmatprep.subr.bf16.mxu0 0
          %1050 = vmatpush2.bf16.msra.mxu0 0
          %1051 = vmatprep.subr.bf16.mxu0 0
          %1052 = vmatpush2.bf16.msra.mxu0 0
          %1053 = vmatprep.subr.bf16.mxu0 0
          %1054 = vmatpush2.bf16.msra.mxu0 0
          %1055 = vmatprep.subr.bf16.mxu0 0
          %1056 = vmatpush2.bf16.msra.mxu0 0
          %1057 = vmatprep.subr.bf16.mxu0 0
          %1058 = vmatpush2.bf16.msra.mxu0 0
          %1059 = vmatprep.subr.bf16.mxu0 0
          %1060 = vmatpush2.bf16.msra.mxu0 0
          %1061 = vmatprep.subr.bf16.mxu0 0
          %1062 = vmatpush2.bf16.msra.mxu0 0
          %1063 = vmatprep.subr.bf16.mxu0 0
          %1064 = vmatpush2.bf16.msra.mxu0 0
          %1065 = vmatprep.mubr.bf16.mxu0 0
          %1066 = vmatmul.mubr.bf16.gmra.mxu0 %v969
          %v1067 = vpop.f32.mrf.mxu0
          %v1068 = vadd.f32 0.0, %v1067
          %v1069 = vpop.f32.mrf.mxu0
          %v1070 = vpop.f32.mrf.mxu0
          %v1071 = vadd.f32 0.0, %v1070
          %v1072 = vpop.f32.mrf.mxu0
          %1073 = vmatprep.mubr.bf16.mxu0 0
          %1074 = vmatmul.mubr.bf16.gmra.mxu0 %v970
          %v1075 = vpop.f32.mrf.mxu0
          %v1076 = vadd.f32 0.0, %v1075
          %v1077 = vpop.f32.mrf.mxu0
          %v1078 = vpop.f32.mrf.mxu0
          %v1079 = vadd.f32 0.0, %v1078
          %v1080 = vpop.f32.mrf.mxu0
          %1081 = vmatprep.mubr.bf16.mxu0 0
          %1082 = vmatmul.mubr.bf16.gmra.mxu0 %v971
          %v1083 = vpop.f32.mrf.mxu0
          %v1084 = vadd.f32 0.0, %v1083
          %v1085 = vpop.f32.mrf.mxu0
          %v1086 = vpop.f32.mrf.mxu0
          %v1087 = vadd.f32 0.0, %v1086
          %v1088 = vpop.f32.mrf.mxu0
          %1089 = vmatprep.mubr.bf16.mxu0 0
          %1090 = vmatmul.mubr.bf16.gmra.mxu0 %v972
          %v1091 = vpop.f32.mrf.mxu0
          %v1092 = vadd.f32 0.0, %v1091
          %v1093 = vpop.f32.mrf.mxu0
          %v1094 = vpop.f32.mrf.mxu0
          %v1095 = vadd.f32 0.0, %v1094
          %v1096 = vpop.f32.mrf.mxu0
          %1097 = vmatprep.mubr.bf16.mxu0 0
          %1098 = vmatmul.mubr.bf16.gmra.mxu0 %v973
          %v1099 = vpop.f32.mrf.mxu0
          %v1100 = vadd.f32 0.0, %v1099
          %v1101 = vpop.f32.mrf.mxu0
          %v1102 = vpop.f32.mrf.mxu0
          %v1103 = vadd.f32 0.0, %v1102
          %v1104 = vpop.f32.mrf.mxu0
          %1105 = vmatprep.mubr.bf16.mxu0 0
          %1106 = vmatmul.mubr.bf16.gmra.mxu0 %v974
          %v1107 = vpop.f32.mrf.mxu0
          %v1108 = vadd.f32 0.0, %v1107
          %v1109 = vpop.f32.mrf.mxu0
          %v1110 = vpop.f32.mrf.mxu0
          %v1111 = vadd.f32 0.0, %v1110
          %v1112 = vpop.f32.mrf.mxu0
          %1113 = vmatprep.mubr.bf16.mxu0 0
          %1114 = vmatmul.mubr.bf16.gmra.mxu0 %v975
          %v1115 = vpop.f32.mrf.mxu0
          %v1116 = vadd.f32 0.0, %v1115
          %v1117 = vpop.f32.mrf.mxu0
          %v1118 = vpop.f32.mrf.mxu0
          %v1119 = vadd.f32 0.0, %v1118
          %v1120 = vpop.f32.mrf.mxu0
          %1121 = vmatprep.mubr.bf16.mxu0 0
          %1122 = vmatmul.mubr.bf16.gmra.mxu0 %v976
          %v1123 = vpop.f32.mrf.mxu0
          %v1124 = vadd.f32 0.0, %v1123
          %v1125 = vpop.f32.mrf.mxu0
          %v1126 = vpop.f32.mrf.mxu0
          %v1127 = vadd.f32 0.0, %v1126
          %v1128 = vpop.f32.mrf.mxu0
          %1129 = vdwg.mxu0
          %v1130 = vadd.f32 %v900, %v1068
          %v1131 = vadd.f32 %v901, %v1071
          %v1132 = vadd.f32 %v902, %v1076
          %v1133 = vadd.f32 %v903, %v1079
          %v1134 = vadd.f32 %v904, %v1084
          %v1135 = vadd.f32 %v905, %v1087
          %v1136 = vadd.f32 %v906, %v1092
          %v1137 = vadd.f32 %v907, %v1095
          %v1138 = vadd.f32 %v908, %v1100
          %v1139 = vadd.f32 %v909, %v1103
          %v1140 = vadd.f32 %v910, %v1108
          %v1141 = vadd.f32 %v911, %v1111
          %v1142 = vadd.f32 %v912, %v1116
          %v1143 = vadd.f32 %v913, %v1119
          %v1144 = vadd.f32 %v914, %v1124
          %v1145 = vadd.f32 %v915, %v1127
          %1146 = vst [vmem:[#allocation2] sm:$0xff] %v1130
          %1147 = vst [vmem:[#allocation2 + $0x8] sm:$0xff] %v1131
          %1148 = vst [vmem:[#allocation2 + $0x10] sm:$0xff] %v1132
          %1149 = vst [vmem:[#allocation2 + $0x18] sm:$0xff] %v1133
          %1150 = vst [vmem:[#allocation2 + $0x20] sm:$0xff] %v1134
          %1151 = vst [vmem:[#allocation2 + $0x28] sm:$0xff] %v1135
          %1152 = vst [vmem:[#allocation2 + $0x30] sm:$0xff] %v1136
          %1153 = vst [vmem:[#allocation2 + $0x38] sm:$0xff] %v1137
          %1154 = vst [vmem:[#allocation2 + $0x40] sm:$0xff] %v1138
          %1155 = vst [vmem:[#allocation2 + $0x48] sm:$0xff] %v1139
          %1156 = vst [vmem:[#allocation2 + $0x50] sm:$0xff] %v1140
          %1157 = vst [vmem:[#allocation2 + $0x58] sm:$0xff] %v1141
          %1158 = vst [vmem:[#allocation2 + $0x60] sm:$0xff] %v1142
          %1159 = vst [vmem:[#allocation2 + $0x68] sm:$0xff] %v1143
          %1160 = vst [vmem:[#allocation2 + $0x70] sm:$0xff] %v1144
          %1161 = vst [vmem:[#allocation2 + $0x78] sm:$0xff] %v1145
        $region68: #{tpu_custom_call.1} parent=39 // pred_fallthru
          _
        // Predicated region
        $region69: #{tpu_custom_call.1} parent=39 // pred_check
          %p1162 = pneg %p333
        $region70: #{tpu_custom_call.1} parent=39 // pred_check_branch
          %1164 = sbr.rel (%p1162) target = $region72
        $region71: #{tpu_custom_call.1} parent=39 // pred_region
          %v1165 = vld [vmem:[#allocation2] sm:$0xff]
          %v1166 = vld [vmem:[#allocation2 + $0x8] sm:$0xff]
          %v1167 = vld [vmem:[#allocation2 + $0x10] sm:$0xff]
          %v1168 = vld [vmem:[#allocation2 + $0x18] sm:$0xff]
          %v1169 = vld [vmem:[#allocation2 + $0x20] sm:$0xff]
          %v1170 = vld [vmem:[#allocation2 + $0x28] sm:$0xff]
          %v1171 = vld [vmem:[#allocation2 + $0x30] sm:$0xff]
          %v1172 = vld [vmem:[#allocation2 + $0x38] sm:$0xff]
          %v1173 = vld [vmem:[#allocation2 + $0x40] sm:$0xff]
          %v1174 = vld [vmem:[#allocation2 + $0x48] sm:$0xff]
          %v1175 = vld [vmem:[#allocation2 + $0x50] sm:$0xff]
          %v1176 = vld [vmem:[#allocation2 + $0x58] sm:$0xff]
          %v1177 = vld [vmem:[#allocation2 + $0x60] sm:$0xff]
          %v1178 = vld [vmem:[#allocation2 + $0x68] sm:$0xff]
          %v1179 = vld [vmem:[#allocation2 + $0x70] sm:$0xff]
          %v1180 = vld [vmem:[#allocation2 + $0x78] sm:$0xff]
          %v1181 = vpack.c.bf16 %v1166, %v1165
          %v1182 = vpack.c.bf16 %v1168, %v1167
          %v1183 = vpack.c.bf16 %v1170, %v1169
          %v1184 = vpack.c.bf16 %v1172, %v1171
          %v1185 = vpack.c.bf16 %v1174, %v1173
          %v1186 = vpack.c.bf16 %v1176, %v1175
          %v1187 = vpack.c.bf16 %v1178, %v1177
          %v1188 = vpack.c.bf16 %v1180, %v1179
          %v1189 = vld [vmem:[%s295] sm:$0xf]
          %v1190 = vld [vmem:[%s295 + $0x4] sm:$0xf]
          %v1191 = vld [vmem:[%s295 + $0x8] sm:$0xf]
          %v1192 = vld [vmem:[%s295 + $0xc] sm:$0xf]
          %v1193 = vld [vmem:[%s295 + $0x10] sm:$0xf]
          %v1194 = vld [vmem:[%s295 + $0x14] sm:$0xf]
          %v1195 = vld [vmem:[%s295 + $0x18] sm:$0xf]
          %v1196 = vld [vmem:[%s295 + $0x1c] sm:$0xf]
          %v1197 = vld [vmem:[%s295 + $0x20] sm:$0xf]
          %v1198 = vld [vmem:[%s295 + $0x24] sm:$0xf]
          %v1199 = vld [vmem:[%s295 + $0x28] sm:$0xf]
          %v1200 = vld [vmem:[%s295 + $0x2c] sm:$0xf]
          %v1201 = vld [vmem:[%s295 + $0x30] sm:$0xf]
          %v1202 = vld [vmem:[%s295 + $0x34] sm:$0xf]
          %v1203 = vld [vmem:[%s295 + $0x38] sm:$0xf]
          %v1204 = vld [vmem:[%s295 + $0x3c] sm:$0xf]
          %v1221 = vunpack.c.l.b16 %v1189
          %v1222 = vunpack.c.l.b16 %v1190
          %v1223 = vunpack.c.l.b16 %v1191
          %v1224 = vunpack.c.l.b16 %v1192
          %v1225 = vunpack.c.l.b16 %v1193
          %v1226 = vunpack.c.l.b16 %v1194
          %v1227 = vunpack.c.l.b16 %v1195
          %v1228 = vunpack.c.l.b16 %v1196
          %v1229 = vunpack.c.l.b16 %v1197
          %v1230 = vunpack.c.l.b16 %v1198
          %v1231 = vunpack.c.l.b16 %v1199
          %v1232 = vunpack.c.l.b16 %v1200
          %v1233 = vunpack.c.l.b16 %v1201
          %v1234 = vunpack.c.l.b16 %v1202
          %v1235 = vunpack.c.l.b16 %v1203
          %v1236 = vunpack.c.l.b16 %v1204
          %v1237 = vpack.c.b16 %v1222, %v1221
          %v1238 = vpack.c.b16 %v1224, %v1223
          %v1239 = vpack.c.b16 %v1226, %v1225
          %v1240 = vpack.c.b16 %v1228, %v1227
          %v1241 = vpack.c.b16 %v1230, %v1229
          %v1242 = vpack.c.b16 %v1232, %v1231
          %v1243 = vpack.c.b16 %v1234, %v1233
          %v1244 = vpack.c.b16 %v1236, %v1235
          %1253 = vmatprep.subr.bf16.mxu0 0
          %1254 = vmatpush1.bf16.msra.mxu0 %v1244
          %1255 = vmatprep.subr.bf16.mxu0 0
          %1256 = vmatpush1.bf16.msra.mxu0 %v1243
          %1257 = vmatprep.subr.bf16.mxu0 0
          %1258 = vmatpush1.bf16.msra.mxu0 %v1242
          %1259 = vmatprep.subr.bf16.mxu0 0
          %1260 = vmatpush1.bf16.msra.mxu0 %v1241
          %1261 = vmatprep.subr.bf16.mxu0 0
          %1262 = vmatpush1.bf16.msra.mxu0 %v1240
          %1263 = vmatprep.subr.bf16.mxu0 0
          %1264 = vmatpush1.bf16.msra.mxu0 %v1239
          %1265 = vmatprep.subr.bf16.mxu0 0
          %1266 = vmatpush1.bf16.msra.mxu0 %v1238
          %1267 = vmatprep.subr.bf16.mxu0 0
          %1268 = vmatpush1.bf16.msra.mxu0 %v1237
          %1269 = vmatprep.subr.bf16.mxu0 0
          %1270 = vmatpush2.bf16.msra.mxu0 0
          %1271 = vmatprep.subr.bf16.mxu0 0
          %1272 = vmatpush2.bf16.msra.mxu0 0
          %1273 = vmatprep.subr.bf16.mxu0 0
          %1274 = vmatpush2.bf16.msra.mxu0 0
          %1275 = vmatprep.subr.bf16.mxu0 0
          %1276 = vmatpush2.bf16.msra.mxu0 0
          %1277 = vmatprep.subr.bf16.mxu0 0
          %1278 = vmatpush2.bf16.msra.mxu0 0
          %1279 = vmatprep.subr.bf16.mxu0 0
          %1280 = vmatpush2.bf16.msra.mxu0 0
          %1281 = vmatprep.subr.bf16.mxu0 0
          %1282 = vmatpush2.bf16.msra.mxu0 0
          %1283 = vmatprep.subr.bf16.mxu0 0
          %1284 = vmatpush2.bf16.msra.mxu0 0
          %1285 = vmatprep.mubr.bf16.mxu0 0
          %1286 = vmatmul.mubr.bf16.gmra.mxu0 %v1181
          %v1287 = vpop.f32.mrf.mxu0
          %v1288 = vadd.f32 0.0, %v1287
          %v1289 = vpop.f32.mrf.mxu0
          %v1290 = vpop.f32.mrf.mxu0
          %v1291 = vadd.f32 0.0, %v1290
          %v1292 = vpop.f32.mrf.mxu0
          %1293 = vmatprep.mubr.bf16.mxu0 0
          %1294 = vmatmul.mubr.bf16.gmra.mxu0 %v1182
          %v1295 = vpop.f32.mrf.mxu0
          %v1296 = vadd.f32 0.0, %v1295
          %v1297 = vpop.f32.mrf.mxu0
          %v1298 = vpop.f32.mrf.mxu0
          %v1299 = vadd.f32 0.0, %v1298
          %v1300 = vpop.f32.mrf.mxu0
          %1301 = vmatprep.mubr.bf16.mxu0 0
          %1302 = vmatmul.mubr.bf16.gmra.mxu0 %v1183
          %v1303 = vpop.f32.mrf.mxu0
          %v1304 = vadd.f32 0.0, %v1303
          %v1305 = vpop.f32.mrf.mxu0
          %v1306 = vpop.f32.mrf.mxu0
          %v1307 = vadd.f32 0.0, %v1306
          %v1308 = vpop.f32.mrf.mxu0
          %1309 = vmatprep.mubr.bf16.mxu0 0
          %1310 = vmatmul.mubr.bf16.gmra.mxu0 %v1184
          %v1311 = vpop.f32.mrf.mxu0
          %v1312 = vadd.f32 0.0, %v1311
          %v1313 = vpop.f32.mrf.mxu0
          %v1314 = vpop.f32.mrf.mxu0
          %v1315 = vadd.f32 0.0, %v1314
          %v1316 = vpop.f32.mrf.mxu0
          %1317 = vmatprep.mubr.bf16.mxu0 0
          %1318 = vmatmul.mubr.bf16.gmra.mxu0 %v1185
          %v1319 = vpop.f32.mrf.mxu0
          %v1320 = vadd.f32 0.0, %v1319
          %v1321 = vpop.f32.mrf.mxu0
          %v1322 = vpop.f32.mrf.mxu0
          %v1323 = vadd.f32 0.0, %v1322
          %v1324 = vpop.f32.mrf.mxu0
          %1325 = vmatprep.mubr.bf16.mxu0 0
          %1326 = vmatmul.mubr.bf16.gmra.mxu0 %v1186
          %v1327 = vpop.f32.mrf.mxu0
          %v1328 = vadd.f32 0.0, %v1327
          %v1329 = vpop.f32.mrf.mxu0
          %v1330 = vpop.f32.mrf.mxu0
          %v1331 = vadd.f32 0.0, %v1330
          %v1332 = vpop.f32.mrf.mxu0
          %1333 = vmatprep.mubr.bf16.mxu0 0
          %1334 = vmatmul.mubr.bf16.gmra.mxu0 %v1187
          %v1335 = vpop.f32.mrf.mxu0
          %v1336 = vadd.f32 0.0, %v1335
          %v1337 = vpop.f32.mrf.mxu0
          %v1338 = vpop.f32.mrf.mxu0
          %v1339 = vadd.f32 0.0, %v1338
          %v1340 = vpop.f32.mrf.mxu0
          %1341 = vmatprep.mubr.bf16.mxu0 0
          %1342 = vmatmul.mubr.bf16.gmra.mxu0 %v1188
          %v1343 = vpop.f32.mrf.mxu0
          %v1344 = vadd.f32 0.0, %v1343
          %v1345 = vpop.f32.mrf.mxu0
          %v1346 = vpop.f32.mrf.mxu0
          %v1347 = vadd.f32 0.0, %v1346
          %v1348 = vpop.f32.mrf.mxu0
          %1349 = vdwg.mxu0
          %v1350 = vld [vmem:[%s327] sm:$0x1]
          %v1352 = vlaneseq
          %v1353 = vshrl.u32 %v1352, 7
          %v1354 = vsub.s32 0, %v1353
          %v1355 = vrot.slane %v1350, %v1354
          %v1357 = vmul.f32 %v1288, %v1355
          %v1358 = vmul.f32 %v1291, %v1355
          %v1359 = vmul.f32 %v1296, %v1355
          %v1360 = vmul.f32 %v1299, %v1355
          %v1361 = vmul.f32 %v1304, %v1355
          %v1362 = vmul.f32 %v1307, %v1355
          %v1363 = vmul.f32 %v1312, %v1355
          %v1364 = vmul.f32 %v1315, %v1355
          %v1365 = vmul.f32 %v1320, %v1355
          %v1366 = vmul.f32 %v1323, %v1355
          %v1367 = vmul.f32 %v1328, %v1355
          %v1368 = vmul.f32 %v1331, %v1355
          %v1369 = vmul.f32 %v1336, %v1355
          %v1370 = vmul.f32 %v1339, %v1355
          %v1371 = vmul.f32 %v1344, %v1355
          %v1372 = vmul.f32 %v1347, %v1355
          %v1373 = vld [vmem:[%s330] sm:$0x1]
          %v1375 = vlaneseq
          %v1376 = vshrl.u32 %v1375, 7
          %v1377 = vsub.s32 0, %v1376
          %v1378 = vrot.slane %v1373, %v1377
          %v1380 = vadd.f32 %v1357, %v1378
          %v1381 = vadd.f32 %v1358, %v1378
          %v1382 = vadd.f32 %v1359, %v1378
          %v1383 = vadd.f32 %v1360, %v1378
          %v1384 = vadd.f32 %v1361, %v1378
          %v1385 = vadd.f32 %v1362, %v1378
          %v1386 = vadd.f32 %v1363, %v1378
          %v1387 = vadd.f32 %v1364, %v1378
          %v1388 = vadd.f32 %v1365, %v1378
          %v1389 = vadd.f32 %v1366, %v1378
          %v1390 = vadd.f32 %v1367, %v1378
          %v1391 = vadd.f32 %v1368, %v1378
          %v1392 = vadd.f32 %v1369, %v1378
          %v1393 = vadd.f32 %v1370, %v1378
          %v1394 = vadd.f32 %v1371, %v1378
          %v1395 = vadd.f32 %v1372, %v1378
          %s1396 = smul.u32 %s25, 128
          // Predicated region
          $region73: #{tpu_custom_call.1} parent=71 // pred_check
            %p1397 = pneg %p369
          $region74: #{tpu_custom_call.1} parent=71 // pred_check_branch
            %1399 = sbr.rel (%p1397) target = $region76
          $region75: #{tpu_custom_call.1} parent=71 // pred_region
            %v1400 = vmax.f32 %v1380, 0.0
            %v1401 = vmax.f32 %v1381, 0.0
            %v1402 = vmax.f32 %v1382, 0.0
            %v1403 = vmax.f32 %v1383, 0.0
            %v1404 = vmax.f32 %v1384, 0.0
            %v1405 = vmax.f32 %v1385, 0.0
            %v1406 = vmax.f32 %v1386, 0.0
            %v1407 = vmax.f32 %v1387, 0.0
            %v1408 = vmax.f32 %v1388, 0.0
            %v1409 = vmax.f32 %v1389, 0.0
            %v1410 = vmax.f32 %v1390, 0.0
            %v1411 = vmax.f32 %v1391, 0.0
            %v1412 = vmax.f32 %v1392, 0.0
            %v1413 = vmax.f32 %v1393, 0.0
            %v1414 = vmax.f32 %v1394, 0.0
            %v1415 = vmax.f32 %v1395, 0.0
            %v1416 = vpack.c.bf16 %v1401, %v1400
            %v1417 = vpack.c.bf16 %v1403, %v1402
            %v1418 = vpack.c.bf16 %v1405, %v1404
            %v1419 = vpack.c.bf16 %v1407, %v1406
            %v1420 = vpack.c.bf16 %v1409, %v1408
            %v1421 = vpack.c.bf16 %v1411, %v1410
            %v1422 = vpack.c.bf16 %v1413, %v1412
            %v1423 = vpack.c.bf16 %v1415, %v1414
            %v1432 = vunpack.c.l.b16 %v1416
            %v1433 = vunpack.c.h.b16 %v1416
            %v1434 = vunpack.c.l.b16 %v1417
            %v1435 = vunpack.c.h.b16 %v1417
            %v1436 = vunpack.c.l.b16 %v1418
            %v1437 = vunpack.c.h.b16 %v1418
            %v1438 = vunpack.c.l.b16 %v1419
            %v1439 = vunpack.c.h.b16 %v1419
            %v1440 = vunpack.c.l.b16 %v1420
            %v1441 = vunpack.c.h.b16 %v1420
            %v1442 = vunpack.c.l.b16 %v1421
            %v1443 = vunpack.c.h.b16 %v1421
            %v1444 = vunpack.c.l.b16 %v1422
            %v1445 = vunpack.c.h.b16 %v1422
            %v1446 = vunpack.c.l.b16 %v1423
            %v1447 = vunpack.c.h.b16 %v1423
            %v1448 = vpack.c.b16 %v1432, %v1432
            %v1449 = vpack.c.b16 %v1433, %v1433
            %v1450 = vpack.c.b16 %v1434, %v1434
            %v1451 = vpack.c.b16 %v1435, %v1435
            %v1452 = vpack.c.b16 %v1436, %v1436
            %v1453 = vpack.c.b16 %v1437, %v1437
            %v1454 = vpack.c.b16 %v1438, %v1438
            %v1455 = vpack.c.b16 %v1439, %v1439
            %v1456 = vpack.c.b16 %v1440, %v1440
            %v1457 = vpack.c.b16 %v1441, %v1441
            %v1458 = vpack.c.b16 %v1442, %v1442
            %v1459 = vpack.c.b16 %v1443, %v1443
            %v1460 = vpack.c.b16 %v1444, %v1444
            %v1461 = vpack.c.b16 %v1445, %v1445
            %v1462 = vpack.c.b16 %v1446, %v1446
            %v1463 = vpack.c.b16 %v1447, %v1447
            %s1480 = sshra.s32 %s1396, 3
            %s1481 = sand.u32 %s1396, 7
            %s1482 = smul.addr %s1480, 4
            %s1483 = scalar_lea.vmem [#allocation3], %s1482
            %1484 = vst [vmem:[%s1483] sm:$0xf] %v1448
            %1485 = vst [vmem:[%s1483 + $0x4] sm:$0xf] %v1449
            %1486 = vst [vmem:[%s1483 + $0x8] sm:$0xf] %v1450
            %1487 = vst [vmem:[%s1483 + $0xc] sm:$0xf] %v1451
            %1488 = vst [vmem:[%s1483 + $0x10] sm:$0xf] %v1452
            %1489 = vst [vmem:[%s1483 + $0x14] sm:$0xf] %v1453
            %1490 = vst [vmem:[%s1483 + $0x18] sm:$0xf] %v1454
            %1491 = vst [vmem:[%s1483 + $0x1c] sm:$0xf] %v1455
            %1492 = vst [vmem:[%s1483 + $0x20] sm:$0xf] %v1456
            %1493 = vst [vmem:[%s1483 + $0x24] sm:$0xf] %v1457
            %1494 = vst [vmem:[%s1483 + $0x28] sm:$0xf] %v1458
            %1495 = vst [vmem:[%s1483 + $0x2c] sm:$0xf] %v1459
            %1496 = vst [vmem:[%s1483 + $0x30] sm:$0xf] %v1460
            %1497 = vst [vmem:[%s1483 + $0x34] sm:$0xf] %v1461
            %1498 = vst [vmem:[%s1483 + $0x38] sm:$0xf] %v1462
            %1499 = vst [vmem:[%s1483 + $0x3c] sm:$0xf] %v1463
          $region76: #{tpu_custom_call.1} parent=71 // pred_fallthru
            _
          // Predicated region
          $region77: #{tpu_custom_call.1} parent=71 // pred_check
            %p1500 = pneg %p630
          $region78: #{tpu_custom_call.1} parent=71 // pred_check_branch
            %1502 = sbr.rel (%p1500) target = $region80
          $region79: #{tpu_custom_call.1} parent=71 // pred_region
            %v1503 = vmax.f32 %v1380, 0.0
            %v1504 = vmax.f32 %v1381, 0.0
            %v1505 = vmax.f32 %v1382, 0.0
            %v1506 = vmax.f32 %v1383, 0.0
            %v1507 = vmax.f32 %v1384, 0.0
            %v1508 = vmax.f32 %v1385, 0.0
            %v1509 = vmax.f32 %v1386, 0.0
            %v1510 = vmax.f32 %v1387, 0.0
            %v1511 = vmax.f32 %v1388, 0.0
            %v1512 = vmax.f32 %v1389, 0.0
            %v1513 = vmax.f32 %v1390, 0.0
            %v1514 = vmax.f32 %v1391, 0.0
            %v1515 = vmax.f32 %v1392, 0.0
            %v1516 = vmax.f32 %v1393, 0.0
            %v1517 = vmax.f32 %v1394, 0.0
            %v1518 = vmax.f32 %v1395, 0.0
            %v1519 = vpack.c.bf16 %v1504, %v1503
            %v1520 = vpack.c.bf16 %v1506, %v1505
            %v1521 = vpack.c.bf16 %v1508, %v1507
            %v1522 = vpack.c.bf16 %v1510, %v1509
            %v1523 = vpack.c.bf16 %v1512, %v1511
            %v1524 = vpack.c.bf16 %v1514, %v1513
            %v1525 = vpack.c.bf16 %v1516, %v1515
            %v1526 = vpack.c.bf16 %v1518, %v1517
            %v1535 = vunpack.c.l.b16 %v1519
            %v1536 = vunpack.c.h.b16 %v1519
            %v1537 = vunpack.c.l.b16 %v1520
            %v1538 = vunpack.c.h.b16 %v1520
            %v1539 = vunpack.c.l.b16 %v1521
            %v1540 = vunpack.c.h.b16 %v1521
            %v1541 = vunpack.c.l.b16 %v1522
            %v1542 = vunpack.c.h.b16 %v1522
            %v1543 = vunpack.c.l.b16 %v1523
            %v1544 = vunpack.c.h.b16 %v1523
            %v1545 = vunpack.c.l.b16 %v1524
            %v1546 = vunpack.c.h.b16 %v1524
            %v1547 = vunpack.c.l.b16 %v1525
            %v1548 = vunpack.c.h.b16 %v1525
            %v1549 = vunpack.c.l.b16 %v1526
            %v1550 = vunpack.c.h.b16 %v1526
            %v1551 = vpack.c.b16 %v1535, %v1535
            %v1552 = vpack.c.b16 %v1536, %v1536
            %v1553 = vpack.c.b16 %v1537, %v1537
            %v1554 = vpack.c.b16 %v1538, %v1538
            %v1555 = vpack.c.b16 %v1539, %v1539
            %v1556 = vpack.c.b16 %v1540, %v1540
            %v1557 = vpack.c.b16 %v1541, %v1541
            %v1558 = vpack.c.b16 %v1542, %v1542
            %v1559 = vpack.c.b16 %v1543, %v1543
            %v1560 = vpack.c.b16 %v1544, %v1544
            %v1561 = vpack.c.b16 %v1545, %v1545
            %v1562 = vpack.c.b16 %v1546, %v1546
            %v1563 = vpack.c.b16 %v1547, %v1547
            %v1564 = vpack.c.b16 %v1548, %v1548
            %v1565 = vpack.c.b16 %v1549, %v1549
            %v1566 = vpack.c.b16 %v1550, %v1550
            %s1583 = sshra.s32 %s1396, 3
            %s1584 = sand.u32 %s1396, 7
            %s1585 = smul.addr %s1583, 4
            %s1586 = scalar_lea.vmem [#allocation4], %s1585
            %1587 = vst [vmem:[%s1586] sm:$0xf] %v1551
            %1588 = vst [vmem:[%s1586 + $0x4] sm:$0xf] %v1552
            %1589 = vst [vmem:[%s1586 + $0x8] sm:$0xf] %v1553
            %1590 = vst [vmem:[%s1586 + $0xc] sm:$0xf] %v1554
            %1591 = vst [vmem:[%s1586 + $0x10] sm:$0xf] %v1555
            %1592 = vst [vmem:[%s1586 + $0x14] sm:$0xf] %v1556
            %1593 = vst [vmem:[%s1586 + $0x18] sm:$0xf] %v1557
            %1594 = vst [vmem:[%s1586 + $0x1c] sm:$0xf] %v1558
            %1595 = vst [vmem:[%s1586 + $0x20] sm:$0xf] %v1559
            %1596 = vst [vmem:[%s1586 + $0x24] sm:$0xf] %v1560
            %1597 = vst [vmem:[%s1586 + $0x28] sm:$0xf] %v1561
            %1598 = vst [vmem:[%s1586 + $0x2c] sm:$0xf] %v1562
            %1599 = vst [vmem:[%s1586 + $0x30] sm:$0xf] %v1563
            %1600 = vst [vmem:[%s1586 + $0x34] sm:$0xf] %v1564
            %1601 = vst [vmem:[%s1586 + $0x38] sm:$0xf] %v1565
            %1602 = vst [vmem:[%s1586 + $0x3c] sm:$0xf] %v1566
          $region80: #{tpu_custom_call.1} parent=71 // pred_fallthru
            _
          // Predicated region
          $region81: #{tpu_custom_call.1} parent=71 // pred_check
            %p1603 = pneg %p896
          $region82: #{tpu_custom_call.1} parent=71 // pred_check_branch
            %1605 = sbr.rel (%p1603) target = $region84
          $region83: #{tpu_custom_call.1} parent=71 // pred_region
            %1606 = vst [vmem:[#allocation11] sm:$0xff] %v1380
            %1607 = vst [vmem:[#allocation11 + $0x8] sm:$0xff] %v1381
            %1608 = vst [vmem:[#allocation11 + $0x10] sm:$0xff] %v1382
            %1609 = vst [vmem:[#allocation11 + $0x18] sm:$0xff] %v1383
            %1610 = vst [vmem:[#allocation11 + $0x20] sm:$0xff] %v1384
            %1611 = vst [vmem:[#allocation11 + $0x28] sm:$0xff] %v1385
            %1612 = vst [vmem:[#allocation11 + $0x30] sm:$0xff] %v1386
            %1613 = vst [vmem:[#allocation11 + $0x38] sm:$0xff] %v1387
            %1614 = vst [vmem:[#allocation11 + $0x40] sm:$0xff] %v1388
            %1615 = vst [vmem:[#allocation11 + $0x48] sm:$0xff] %v1389
            %1616 = vst [vmem:[#allocation11 + $0x50] sm:$0xff] %v1390
            %1617 = vst [vmem:[#allocation11 + $0x58] sm:$0xff] %v1391
            %1618 = vst [vmem:[#allocation11 + $0x60] sm:$0xff] %v1392
            %1619 = vst [vmem:[#allocation11 + $0x68] sm:$0xff] %v1393
            %1620 = vst [vmem:[#allocation11 + $0x70] sm:$0xff] %v1394
            %1621 = vst [vmem:[#allocation11 + $0x78] sm:$0xff] %v1395
          $region84: #{tpu_custom_call.1} parent=71 // pred_fallthru
            _
        $region72: #{tpu_custom_call.1} parent=39 // pred_fallthru
          _
        // Predicated region
        $region85: #{tpu_custom_call.1} parent=39 // pred_check
          %p1622 = pneg %p188
        $region86: #{tpu_custom_call.1} parent=39 // pred_check_branch
          %1624 = sbr.rel (%p1622) target = $region88
        $region87: #{tpu_custom_call.1} parent=39 // pred_region
          %s1625 = smul.u32 16, %s25
          %s1627 = ssub.s32 2048, 2048
          %1628 = vsyncadd [#allocation7], %s1627
          %s1629 = smul.addr %s1625, 128
          %s1630 = scalar_lea.hbm %s5, %s1629
          %s1631 = sshll.u32 [#allocation11], 4
          %s1632 = int_to_ptr.vmem [resolvable:$true] %s1631
          %1637 = dma.vmem_to_hbm [thread:$0]  %s1632, 2048, %s1630, [#allocation7], 128, 128, 8
        $region88: #{tpu_custom_call.1} parent=39 // pred_fallthru
          _
        // Predicated region
        $region89: #{tpu_custom_call.1} parent=39 // pred_check
          %p1638 = pneg %p188
        $region90: #{tpu_custom_call.1} parent=39 // pred_check_branch
          %1640 = sbr.rel (%p1638) target = $region92
        $region91: #{tpu_custom_call.1} parent=39 // pred_region
          %1641 = dma.done [#allocation7], 2048
        $region92: #{tpu_custom_call.1} parent=39 // pred_fallthru
          _
      $region40: #{tpu_custom_call.1} parent=5 // pred_fallthru
        _
      %p1642 = scmp.le.s32.totalorder 2, %s14
      // Predicated region
      $region93: #{tpu_custom_call.1} parent=5 // pred_check
        %p1643 = pneg %p1642
      $region94: #{tpu_custom_call.1} parent=5 // pred_check_branch
        %1645 = sbr.rel (%p1643) target = $region96
      $region95: #{tpu_custom_call.1} parent=5 // pred_region
        %s1646 = ssub.s32 %s14, 2
      $region96: #{tpu_custom_call.1} parent=5 // pred_fallthru
        _
    $region6: #{tpu_custom_call.1} parent=1 // loop_footer
      %s18 = sadd.s32 1, %s14
    $region7: #{tpu_custom_call.1} parent=1 // loop_footer_branch
      %13 = sbr.rel target = $region3
    $region8: #{tpu_custom_call.1} parent=1 // loop_exit
      _
    %1647 = vsyncpa [#allocation6], 1
    %s1648 = scalar_lea.sflag [#allocation6], 1
    %1649 = vsyncpa %s1648, 1
    %1650 = vsyncpa [#allocation9], 1
    %1651 = vsyncpa [#allocation7], 1
    %s1652 = scalar_lea.sflag [#allocation7], 1
    %1653 = vsyncpa %s1652, 1

</llo_original>
